<compile_context>
chip_gen: v5e
topology: v5e:2x2
jax: 0.10.0
libtpu: 0.0.40
codegen_flags: <defaults>
</compile_context>

<pallas_src>
import math
import numpy as np

import jax
import jax.numpy as jnp
from jax import lax
from jax.experimental import pallas as pl
from jax.experimental.pallas import tpu as pltpu

LN_EPS = 1e-12


def filter_layer_kernel(x_ref, cr_ref, ci_ref, dr_ref, di_ref,
                        wr_ref, wi_ref, red_ref, bc_ref,
                        gamma_ref, beta_ref, o_ref):
    N = x_ref.shape[1]
    TB = red_ref.shape[1]
    H = N // TB

    x = x_ref[...]                                   # (S, N) f32, lane-dense
    xb = x.astype(jnp.bfloat16)

    # rfft(x, dim=seq, norm='ortho'): two bf16 MXU dots (real / imag rows),
    # no stacked matrix -> no odd-F sublane-unaligned slices.
    xr = jnp.dot(cr_ref[...], xb, preferred_element_type=jnp.float32)  # (F, N)
    xi = jnp.dot(ci_ref[...], xb, preferred_element_type=jnp.float32)  # (F, N)

    # Complex multiply by the learned filter (pre-tiled per batch), in f32.
    wr = wr_ref[...]
    wi = wi_ref[...]
    yr = (xr * wr - xi * wi).astype(jnp.bfloat16)
    yi = (xr * wi + xi * wr).astype(jnp.bfloat16)

    # irfft(y, n=S, dim=seq, norm='ortho'): two bf16 MXU dots, no concatenate.
    y = jnp.dot(dr_ref[...], yr, preferred_element_type=jnp.float32)
    y = y + jnp.dot(di_ref[...], yi, preferred_element_type=jnp.float32)

    # out_dropout is identity at inference time.
    # TODO(synk): training-mode dropout would need pltpu.prng_* masking here.
    h = y + x                                        # (S, N) f32 residual

    # TF-style LayerNorm over each H-wide lane segment without leaving the
    # lane-dense layout: block-diagonal bf16 ONES (N, TB) reduces per segment
    # on the MXU, its (TB, N) transpose broadcasts the stats back; the 1/H
    # scale stays an exact f32 scalar.
    # TODO(synk): for very large S on v7x, row-tile this epilogue over S.
    red = red_ref[...]                               # (N, TB) bf16 ones
    bc = bc_ref[...]                                 # (TB, N) bf16 ones
    inv_h = jnp.float32(1.0 / H)

    hsum = jnp.dot(h.astype(jnp.bfloat16), red,
                   preferred_element_type=jnp.float32)             # (S, TB)
    u = jnp.dot((hsum * inv_h).astype(jnp.bfloat16), bc,
                preferred_element_type=jnp.float32)                # (S, N)
    d = h - u
    ssum = jnp.dot((d * d).astype(jnp.bfloat16), red,
                   preferred_element_type=jnp.float32)             # (S, TB)
    s = jnp.dot((ssum * inv_h).astype(jnp.bfloat16), bc,
                preferred_element_type=jnp.float32)                # (S, N)
    nh = d * lax.rsqrt(s + LN_EPS)
    o_ref[...] = gamma_ref[...] * nh + beta_ref[...]


def _dft_matrices(S: int):
    """Real-DFT / inverse-DFT matrices matching torch rfft/irfft(norm='ortho')."""
    F = S // 2 + 1
    t = np.arange(S, dtype=np.float64)
    f = np.arange(F, dtype=np.float64)
    ang = 2.0 * math.pi * f[:, None] * t[None, :] / S            # (F, S)
    inv_sqrt = 1.0 / math.sqrt(S)

    cr = np.cos(ang) * inv_sqrt                                  # (F, S) real rows
    ci = -np.sin(ang) * inv_sqrt                                 # (F, S) imag rows

    # irfft (ortho): DC (and Nyquist for even S) counted once, others twice;
    # imag parts of DC / Nyquist are discarded by the C2R transform.
    scale = np.full((F,), 2.0)
    keep_imag = np.ones((F,))
    scale[0] = 1.0
    keep_imag[0] = 0.0
    if S % 2 == 0:
        scale[-1] = 1.0
        keep_imag[-1] = 0.0

    dr = (np.cos(ang) * inv_sqrt * scale[:, None]).T                          # (S, F)
    di = (-np.sin(ang) * inv_sqrt * scale[:, None] * keep_imag[:, None]).T    # (S, F)

    to_bf16 = lambda m: jnp.asarray(m, jnp.bfloat16)   # MXU-native operands
    return to_bf16(cr), to_bf16(ci), to_bf16(dr), to_bf16(di)


def _pallas_forward(x_t, consts, *, S, F, N, TB, n_blocks, vmem_limit_bytes,
                    single_buffer_constants):
    cr, ci, dr, di, wr, wi, red, bc, gamma, beta = consts
    const_kw = (dict(pipeline_mode=pl.Buffered(1))
                if single_buffer_constants else {})

    def cspec(shape):
        # Constant-index-map operand: single-buffered (index never changes).
        return pl.BlockSpec(shape, lambda b: (0, 0), **const_kw)

    return pl.pallas_call(
        filter_layer_kernel,
        out_shape=jax.ShapeDtypeStruct((S, x_t.shape[1]), jnp.float32),
        grid_spec=pltpu.PrefetchScalarGridSpec(
            num_scalar_prefetch=0,
            grid=(n_blocks,),
            in_specs=[
                pl.BlockSpec((S, N), lambda b: (0, b)),   # x, lane-dense block
                cspec((F, S)),                            # fwd DFT real rows
                cspec((F, S)),                            # fwd DFT imag rows
                cspec((S, F)),                            # inv DFT real cols
                cspec((S, F)),                            # inv DFT imag cols
                cspec((F, N)),                            # filter real
                cspec((F, N)),                            # filter imag
                cspec((N, TB)),                           # LN segment-reduce ones
                cspec((TB, N)),                           # LN segment-broadcast ones
                cspec((1, N)),                            # LN gamma
                cspec((1, N)),                            # LN beta
            ],
            out_specs=pl.BlockSpec((S, N), lambda b: (0, b)),
        ),
        compiler_params=pltpu.CompilerParams(
            dimension_semantics=("parallel",),
            vmem_limit_bytes=vmem_limit_bytes),
    )(x_t, cr, ci, dr, di, wr, wi, red, bc, gamma, beta)


def filter_layer(x, complex_weight, ln_weight, ln_bias, *, lane_multiple=256):
    """x: (B, S, H) f32; complex_weight: (1, S//2+1, H, 2) f32."""
    B, S, H = x.shape
    F = S // 2 + 1

    # Batches per grid block: the block's lane width N = TB*H is a multiple of
    # 256 (fills the v6e/v7x MXU; also a multiple of the 128-lane vreg on v5e).
    # The batch is always padded up to a multiple of TB -- padded rows are
    # zeros and get sliced off, lane-dense stores are the bigger win.
    # Note: at tiny B this gives n_blocks == 1 (no megacore sharding on v7x);
    # larger serving batches naturally produce >= 2 parallel blocks.
    TB = math.lcm(H, lane_multiple) // H
    Bp = pl.cdiv(B, TB) * TB
    N = TB * H
    n_blocks = Bp // TB

    if Bp != B:
        x = jnp.pad(x, ((0, Bp - B), (0, 0), (0, 0)))

    # (Bp, S, H) -> (S, Bp*H): lane index = b*H + h (batch-major segments).
    # TODO(synk): if this repack shows up in profiles, keep the (S, Bp*H)
    # layout end-to-end or fold it into the kernel with pltpu.einshape.
    x_t = jnp.transpose(x, (1, 0, 2)).reshape(S, Bp * H)

    cr, ci, dr, di = _dft_matrices(S)
    wr = jnp.tile(complex_weight[0, :, :, 0], (1, TB))            # (F, N) f32
    wi = jnp.tile(complex_weight[0, :, :, 1], (1, TB))            # (F, N) f32
    gamma = jnp.tile(ln_weight.reshape(1, H).astype(jnp.float32), (1, TB))
    beta = jnp.tile(ln_bias.reshape(1, H).astype(jnp.float32), (1, TB))

    # Block-diagonal ONES matrices (exact in bf16) for per-segment LayerNorm
    # statistics; the 1/H scaling stays an f32 scalar inside the kernel.
    red = jnp.asarray(np.kron(np.eye(TB), np.ones((H, 1))), jnp.bfloat16)  # (N, TB)
    bc = jnp.asarray(np.kron(np.eye(TB), np.ones((1, H))), jnp.bfloat16)   # (TB, N)

    # Scoped-VMEM budget: single-buffered constants + double-buffered x/out
    # blocks + live f32 temporaries, clamped to [32 MiB, 64 MiB] so it raises
    # v5e's 16 MiB default without exceeding v7x's 64 MiB physical VMEM.
    # TODO(synk): if this exceeds 64 MiB on v7x (very large S), tile the DFT
    # contraction over a K grid axis with a pl.when-initialized accumulator.
    est = (4 * F * S * 2            # cr/ci/dr/di bf16
           + 2 * F * N * 4          # wr/wi f32
           + 2 * N * 4              # gamma/beta f32
           + 2 * N * TB * 2         # LN ones matrices bf16
           + 2 * 2 * S * N * 4      # x/out blocks, double-buffered
           + 12 * S * N * 4)        # live f32 temporaries in the kernel body
    vmem_limit_bytes = int(min(max(2 * est, 32 * 1024 * 1024),
                               64 * 1024 * 1024))

    consts = (cr, ci, dr, di, wr, wi, red, bc, gamma, beta)
    kwargs = dict(S=S, F=F, N=N, TB=TB, n_blocks=n_blocks,
                  vmem_limit_bytes=vmem_limit_bytes)
    try:
        out_t = _pallas_forward(x_t, consts, single_buffer_constants=True,
                                **kwargs)
        out_t.block_until_ready()
    except Exception:
        # pipeline_mode=pl.Buffered(1) unsupported on this jax/libtpu build:
        # fall back to default (double-buffered) constants; semantics identical.
        out_t = _pallas_forward(x_t, consts, single_buffer_constants=False,
                                **kwargs)

    # (S, Bp*H) -> (B, S, H); drop batch padding.
    return out_t.reshape(S, Bp, H).transpose(1, 0, 2)[:B]


def _reference(x, complex_weight, ln_weight, ln_bias):
    """Pure-JAX reference mirroring the PyTorch forward."""
    B, S, H = x.shape
    xf = jnp.fft.rfft(x, axis=1, norm="ortho")
    w = complex_weight[..., 0] + 1j * complex_weight[..., 1]     # (1, F, H)
    y = jnp.fft.irfft(xf * w, n=S, axis=1, norm="ortho")
    h = y + x
    u = h.mean(-1, keepdims=True)
    s = ((h - u) ** 2).mean(-1, keepdims=True)
    nh = (h - u) / jnp.sqrt(s + LN_EPS)
    return ln_weight * nh + ln_bias


if __name__ == "__main__":
    S, H = 8, 32                              # max_seq_len, hidden_size
    key = jax.random.PRNGKey(0)
    k_w, k_g, k_b, k_x1, k_x2 = jax.random.split(key, 5)

    # nn.Parameter(torch.randn(1, S//2+1, H, 2) * 0.02)
    complex_weight = jax.random.normal(
        k_w, (1, S // 2 + 1, H, 2), dtype=jnp.float32) * 0.02
    ln_weight = 1.0 + 0.1 * jax.random.normal(k_g, (H,), dtype=jnp.float32)
    ln_bias = 0.1 * jax.random.normal(k_b, (H,), dtype=jnp.float32)

    # B=2 and B=5 both exercise batch padding to the lane-dense block width.
    for B, kx in ((2, k_x1), (5, k_x2)):
        x = jax.random.normal(kx, (B, S, H), dtype=jnp.float32)
        out = jax.block_until_ready(
            filter_layer(x, complex_weight, ln_weight, ln_bias))
        ref = _reference(x, complex_weight, ln_weight, ln_bias)
        assert out.shape == (B, S, H)
        err = float(jnp.max(jnp.abs(out - ref)))
        # bf16 MXU operands -> slightly looser tolerance than pure f32.
        assert jnp.allclose(out, ref, atol=1e-2, rtol=1e-2), \
            f"B={B}: max abs err = {err}"

    print("KERNEL_OK")
</pallas_src>

<mosaic_0001>
module attributes {stable_mosaic.version = 11 : i64} {
  func.func @filter_layer_kernel(%arg0: i32, %arg1: memref<8x256xf32, #tpu.memory_space<vmem>>, %arg2: memref<5x8xbf16, #tpu.memory_space<vmem>>, %arg3: memref<5x8xbf16, #tpu.memory_space<vmem>>, %arg4: memref<8x5xbf16, #tpu.memory_space<vmem>>, %arg5: memref<8x5xbf16, #tpu.memory_space<vmem>>, %arg6: memref<5x256xf32, #tpu.memory_space<vmem>>, %arg7: memref<5x256xf32, #tpu.memory_space<vmem>>, %arg8: memref<256x8xbf16, #tpu.memory_space<vmem>>, %arg9: memref<8x256xbf16, #tpu.memory_space<vmem>>, %arg10: memref<1x256xf32, #tpu.memory_space<vmem>>, %arg11: memref<1x256xf32, #tpu.memory_space<vmem>>, %arg12: memref<8x256xf32, #tpu.memory_space<vmem>>) attributes {dimension_semantics = [#tpu.dimension_semantics<parallel>], iteration_bounds = array<i64: 1>, scalar_prefetch = 0 : i64, scratch_operands = 0 : i64, tpu.core_type = #tpu.core_type<tc>, window_params = [{transform_indices = @transform_0, window_bounds = array<i64: 8, 256>}, {pipeline_mode = #tpu.pipeline_mode<synchronous>, transform_indices = @transform_1, window_bounds = array<i64: 5, 8>}, {pipeline_mode = #tpu.pipeline_mode<synchronous>, transform_indices = @transform_2, window_bounds = array<i64: 5, 8>}, {pipeline_mode = #tpu.pipeline_mode<synchronous>, transform_indices = @transform_3, window_bounds = array<i64: 8, 5>}, {pipeline_mode = #tpu.pipeline_mode<synchronous>, transform_indices = @transform_4, window_bounds = array<i64: 8, 5>}, {pipeline_mode = #tpu.pipeline_mode<synchronous>, transform_indices = @transform_5, window_bounds = array<i64: 5, 256>}, {pipeline_mode = #tpu.pipeline_mode<synchronous>, transform_indices = @transform_6, window_bounds = array<i64: 5, 256>}, {pipeline_mode = #tpu.pipeline_mode<synchronous>, transform_indices = @transform_7, window_bounds = array<i64: 256, 8>}, {pipeline_mode = #tpu.pipeline_mode<synchronous>, transform_indices = @transform_8, window_bounds = array<i64: 8, 256>}, {pipeline_mode = #tpu.pipeline_mode<synchronous>, transform_indices = @transform_9, window_bounds = array<i64: 1, 256>}, {pipeline_mode = #tpu.pipeline_mode<synchronous>, transform_indices = @transform_10, window_bounds = array<i64: 1, 256>}, {transform_indices = @transform_11, window_bounds = array<i64: 8, 256>}]} {
    %c0 = arith.constant 0 : index
    %c0_0 = arith.constant 0 : index
    %0 = vector.load %arg1[%c0, %c0_0] : memref<8x256xf32, #tpu.memory_space<vmem>>, vector<8x256xf32>
    %1 = arith.truncf %0 : vector<8x256xf32> to vector<8x256xbf16>
    %c0_1 = arith.constant 0 : index
    %c0_2 = arith.constant 0 : index
    %2 = vector.load %arg2[%c0_1, %c0_2] : memref<5x8xbf16, #tpu.memory_space<vmem>>, vector<5x8xbf16>
    %cst = arith.constant dense<0.000000e+00> : vector<5x256xf32>
    %3 = tpu.matmul %2, %1, %cst {dimension_numbers = #tpu.dot_dimension_numbers<[1], [0], [0], [1], [0, 0, 1, 1], [], []>} : vector<5x8xbf16>, vector<8x256xbf16>, vector<5x256xf32> -> vector<5x256xf32>
    %c0_3 = arith.constant 0 : index
    %c0_4 = arith.constant 0 : index
    %4 = vector.load %arg3[%c0_3, %c0_4] : memref<5x8xbf16, #tpu.memory_space<vmem>>, vector<5x8xbf16>
    %cst_5 = arith.constant dense<0.000000e+00> : vector<5x256xf32>
    %5 = tpu.matmul %4, %1, %cst_5 {dimension_numbers = #tpu.dot_dimension_numbers<[1], [0], [0], [1], [0, 0, 1, 1], [], []>} : vector<5x8xbf16>, vector<8x256xbf16>, vector<5x256xf32> -> vector<5x256xf32>
    %c0_6 = arith.constant 0 : index
    %c0_7 = arith.constant 0 : index
    %6 = vector.load %arg6[%c0_6, %c0_7] : memref<5x256xf32, #tpu.memory_space<vmem>>, vector<5x256xf32>
    %c0_8 = arith.constant 0 : index
    %c0_9 = arith.constant 0 : index
    %7 = vector.load %arg7[%c0_8, %c0_9] : memref<5x256xf32, #tpu.memory_space<vmem>>, vector<5x256xf32>
    %8 = arith.mulf %3, %6 : vector<5x256xf32>
    %9 = arith.mulf %5, %7 : vector<5x256xf32>
    %10 = arith.subf %8, %9 : vector<5x256xf32>
    %11 = arith.truncf %10 : vector<5x256xf32> to vector<5x256xbf16>
    %12 = arith.mulf %3, %7 : vector<5x256xf32>
    %13 = arith.mulf %5, %6 : vector<5x256xf32>
    %14 = arith.addf %12, %13 : vector<5x256xf32>
    %15 = arith.truncf %14 : vector<5x256xf32> to vector<5x256xbf16>
    %c0_10 = arith.constant 0 : index
    %c0_11 = arith.constant 0 : index
    %16 = vector.load %arg4[%c0_10, %c0_11] : memref<8x5xbf16, #tpu.memory_space<vmem>>, vector<8x5xbf16>
    %cst_12 = arith.constant dense<0.000000e+00> : vector<8x256xf32>
    %17 = tpu.matmul %16, %11, %cst_12 {dimension_numbers = #tpu.dot_dimension_numbers<[1], [0], [0], [1], [0, 0, 1, 1], [], []>} : vector<8x5xbf16>, vector<5x256xbf16>, vector<8x256xf32> -> vector<8x256xf32>
    %c0_13 = arith.constant 0 : index
    %c0_14 = arith.constant 0 : index
    %18 = vector.load %arg5[%c0_13, %c0_14] : memref<8x5xbf16, #tpu.memory_space<vmem>>, vector<8x5xbf16>
    %cst_15 = arith.constant dense<0.000000e+00> : vector<8x256xf32>
    %19 = tpu.matmul %18, %15, %cst_15 {dimension_numbers = #tpu.dot_dimension_numbers<[1], [0], [0], [1], [0, 0, 1, 1], [], []>} : vector<8x5xbf16>, vector<5x256xbf16>, vector<8x256xf32> -> vector<8x256xf32>
    %20 = arith.addf %17, %19 : vector<8x256xf32>
    %21 = arith.addf %20, %0 : vector<8x256xf32>
    %c0_16 = arith.constant 0 : index
    %c0_17 = arith.constant 0 : index
    %22 = vector.load %arg8[%c0_16, %c0_17] : memref<256x8xbf16, #tpu.memory_space<vmem>>, vector<256x8xbf16>
    %c0_18 = arith.constant 0 : index
    %c0_19 = arith.constant 0 : index
    %23 = vector.load %arg9[%c0_18, %c0_19] : memref<8x256xbf16, #tpu.memory_space<vmem>>, vector<8x256xbf16>
    %24 = arith.truncf %21 : vector<8x256xf32> to vector<8x256xbf16>
    %cst_20 = arith.constant dense<0.000000e+00> : vector<8x8xf32>
    %25 = tpu.matmul %24, %22, %cst_20 {dimension_numbers = #tpu.dot_dimension_numbers<[1], [0], [0], [1], [0, 0, 1, 1], [], []>} : vector<8x256xbf16>, vector<256x8xbf16>, vector<8x8xf32> -> vector<8x8xf32>
    %cst_21 = arith.constant 3.125000e-02 : f32
    %26 = vector.broadcast %cst_21 : f32 to vector<8x8xf32>
    %27 = arith.mulf %25, %26 : vector<8x8xf32>
    %28 = arith.truncf %27 : vector<8x8xf32> to vector<8x8xbf16>
    %cst_22 = arith.constant dense<0.000000e+00> : vector<8x256xf32>
    %29 = tpu.matmul %28, %23, %cst_22 {dimension_numbers = #tpu.dot_dimension_numbers<[1], [0], [0], [1], [0, 0, 1, 1], [], []>} : vector<8x8xbf16>, vector<8x256xbf16>, vector<8x256xf32> -> vector<8x256xf32>
    %30 = arith.subf %21, %29 : vector<8x256xf32>
    %31 = arith.mulf %30, %30 : vector<8x256xf32>
    %32 = arith.truncf %31 : vector<8x256xf32> to vector<8x256xbf16>
    %cst_23 = arith.constant dense<0.000000e+00> : vector<8x8xf32>
    %33 = tpu.matmul %32, %22, %cst_23 {dimension_numbers = #tpu.dot_dimension_numbers<[1], [0], [0], [1], [0, 0, 1, 1], [], []>} : vector<8x256xbf16>, vector<256x8xbf16>, vector<8x8xf32> -> vector<8x8xf32>
    %cst_24 = arith.constant 3.125000e-02 : f32
    %34 = vector.broadcast %cst_24 : f32 to vector<8x8xf32>
    %35 = arith.mulf %33, %34 : vector<8x8xf32>
    %36 = arith.truncf %35 : vector<8x8xf32> to vector<8x8xbf16>
    %cst_25 = arith.constant dense<0.000000e+00> : vector<8x256xf32>
    %37 = tpu.matmul %36, %23, %cst_25 {dimension_numbers = #tpu.dot_dimension_numbers<[1], [0], [0], [1], [0, 0, 1, 1], [], []>} : vector<8x8xbf16>, vector<8x256xbf16>, vector<8x256xf32> -> vector<8x256xf32>
    %cst_26 = arith.constant 9.99999996E-13 : f32
    %38 = vector.broadcast %cst_26 : f32 to vector<8x256xf32>
    %39 = arith.addf %37, %38 : vector<8x256xf32>
    %40 = math.rsqrt %39 : vector<8x256xf32>
    %41 = arith.mulf %30, %40 : vector<8x256xf32>
    %c0_27 = arith.constant 0 : index
    %c0_28 = arith.constant 0 : index
    %42 = vector.load %arg10[%c0_27, %c0_28] : memref<1x256xf32, #tpu.memory_space<vmem>>, vector<1x256xf32>
    %43 = vector.broadcast %42 : vector<1x256xf32> to vector<8x256xf32>
    %44 = arith.mulf %43, %41 : vector<8x256xf32>
    %c0_29 = arith.constant 0 : index
    %c0_30 = arith.constant 0 : index
    %45 = vector.load %arg11[%c0_29, %c0_30] : memref<1x256xf32, #tpu.memory_space<vmem>>, vector<1x256xf32>
    %46 = vector.broadcast %45 : vector<1x256xf32> to vector<8x256xf32>
    %47 = arith.addf %44, %46 : vector<8x256xf32>
    %c0_31 = arith.constant 0 : index
    %c0_32 = arith.constant 0 : index
    %48 = vector.load %arg12[%c0_31, %c0_32] : memref<8x256xf32, #tpu.memory_space<vmem>>, vector<8x256xf32>
    tpu.vector_store %arg12[%c0_31, %c0_32], %47 {strides = array<i32>} : memref<8x256xf32, #tpu.memory_space<vmem>>, vector<8x256xf32>,
    return
  }
  func.func @transform_0(%arg0: i32) -> (i32, i32) {
    %c0_i32 = arith.constant 0 : i32
    %c0_i32_0 = arith.constant 0 : i32
    return %c0_i32, %arg0 : i32, i32
  }
  func.func @transform_1(%arg0: i32) -> (i32, i32) {
    %c0_i32 = arith.constant 0 : i32
    %c0_i32_0 = arith.constant 0 : i32
    %c0_i32_1 = arith.constant 0 : i32
    return %c0_i32, %c0_i32_0 : i32, i32
  }
  func.func @transform_2(%arg0: i32) -> (i32, i32) {
    %c0_i32 = arith.constant 0 : i32
    %c0_i32_0 = arith.constant 0 : i32
    %c0_i32_1 = arith.constant 0 : i32
    return %c0_i32, %c0_i32_0 : i32, i32
  }
  func.func @transform_3(%arg0: i32) -> (i32, i32) {
    %c0_i32 = arith.constant 0 : i32
    %c0_i32_0 = arith.constant 0 : i32
    %c0_i32_1 = arith.constant 0 : i32
    return %c0_i32, %c0_i32_0 : i32, i32
  }
  func.func @transform_4(%arg0: i32) -> (i32, i32) {
    %c0_i32 = arith.constant 0 : i32
    %c0_i32_0 = arith.constant 0 : i32
    %c0_i32_1 = arith.constant 0 : i32
    return %c0_i32, %c0_i32_0 : i32, i32
  }
  func.func @transform_5(%arg0: i32) -> (i32, i32) {
    %c0_i32 = arith.constant 0 : i32
    %c0_i32_0 = arith.constant 0 : i32
    %c0_i32_1 = arith.constant 0 : i32
    return %c0_i32, %c0_i32_0 : i32, i32
  }
  func.func @transform_6(%arg0: i32) -> (i32, i32) {
    %c0_i32 = arith.constant 0 : i32
    %c0_i32_0 = arith.constant 0 : i32
    %c0_i32_1 = arith.constant 0 : i32
    return %c0_i32, %c0_i32_0 : i32, i32
  }
  func.func @transform_7(%arg0: i32) -> (i32, i32) {
    %c0_i32 = arith.constant 0 : i32
    %c0_i32_0 = arith.constant 0 : i32
    %c0_i32_1 = arith.constant 0 : i32
    return %c0_i32, %c0_i32_0 : i32, i32
  }
  func.func @transform_8(%arg0: i32) -> (i32, i32) {
    %c0_i32 = arith.constant 0 : i32
    %c0_i32_0 = arith.constant 0 : i32
    %c0_i32_1 = arith.constant 0 : i32
    return %c0_i32, %c0_i32_0 : i32, i32
  }
  func.func @transform_9(%arg0: i32) -> (i32, i32) {
    %c0_i32 = arith.constant 0 : i32
    %c0_i32_0 = arith.constant 0 : i32
    %c0_i32_1 = arith.constant 0 : i32
    return %c0_i32, %c0_i32_0 : i32, i32
  }
  func.func @transform_10(%arg0: i32) -> (i32, i32) {
    %c0_i32 = arith.constant 0 : i32
    %c0_i32_0 = arith.constant 0 : i32
    %c0_i32_1 = arith.constant 0 : i32
    return %c0_i32, %c0_i32_0 : i32, i32
  }
  func.func @transform_11(%arg0: i32) -> (i32, i32) {
    %c0_i32 = arith.constant 0 : i32
    %c0_i32_0 = arith.constant 0 : i32
    return %c0_i32, %arg0 : i32, i32
  }
}

module attributes {stable_mosaic.version = 11 : i64} {
  func.func @filter_layer_kernel(%arg0: i32, %arg1: memref<8x256xf32, #tpu.memory_space<vmem>>, %arg2: memref<5x8xbf16, #tpu.memory_space<vmem>>, %arg3: memref<5x8xbf16, #tpu.memory_space<vmem>>, %arg4: memref<8x5xbf16, #tpu.memory_space<vmem>>, %arg5: memref<8x5xbf16, #tpu.memory_space<vmem>>, %arg6: memref<5x256xf32, #tpu.memory_space<vmem>>, %arg7: memref<5x256xf32, #tpu.memory_space<vmem>>, %arg8: memref<256x8xbf16, #tpu.memory_space<vmem>>, %arg9: memref<8x256xbf16, #tpu.memory_space<vmem>>, %arg10: memref<1x256xf32, #tpu.memory_space<vmem>>, %arg11: memref<1x256xf32, #tpu.memory_space<vmem>>, %arg12: memref<8x256xf32, #tpu.memory_space<vmem>>) attributes {dimension_semantics = [#tpu.dimension_semantics<parallel>], iteration_bounds = array<i64: 1>, scalar_prefetch = 0 : i64, scratch_operands = 0 : i64, tpu.core_type = #tpu.core_type<tc>, window_params = [{transform_indices = @transform_0, window_bounds = array<i64: 8, 256>}, {pipeline_mode = #tpu.pipeline_mode<synchronous>, transform_indices = @transform_1, window_bounds = array<i64: 5, 8>}, {pipeline_mode = #tpu.pipeline_mode<synchronous>, transform_indices = @transform_2, window_bounds = array<i64: 5, 8>}, {pipeline_mode = #tpu.pipeline_mode<synchronous>, transform_indices = @transform_3, window_bounds = array<i64: 8, 5>}, {pipeline_mode = #tpu.pipeline_mode<synchronous>, transform_indices = @transform_4, window_bounds = array<i64: 8, 5>}, {pipeline_mode = #tpu.pipeline_mode<synchronous>, transform_indices = @transform_5, window_bounds = array<i64: 5, 256>}, {pipeline_mode = #tpu.pipeline_mode<synchronous>, transform_indices = @transform_6, window_bounds = array<i64: 5, 256>}, {pipeline_mode = #tpu.pipeline_mode<synchronous>, transform_indices = @transform_7, window_bounds = array<i64: 256, 8>}, {pipeline_mode = #tpu.pipeline_mode<synchronous>, transform_indices = @transform_8, window_bounds = array<i64: 8, 256>}, {pipeline_mode = #tpu.pipeline_mode<synchronous>, transform_indices = @transform_9, window_bounds = array<i64: 1, 256>}, {pipeline_mode = #tpu.pipeline_mode<synchronous>, transform_indices = @transform_10, window_bounds = array<i64: 1, 256>}, {transform_indices = @transform_11, window_bounds = array<i64: 8, 256>}]} {
    %c0 = arith.constant 0 : index
    %c0_0 = arith.constant 0 : index
    %0 = vector.load %arg1[%c0, %c0_0] : memref<8x256xf32, #tpu.memory_space<vmem>>, vector<8x256xf32>
    %1 = arith.truncf %0 : vector<8x256xf32> to vector<8x256xbf16>
    %c0_1 = arith.constant 0 : index
    %c0_2 = arith.constant 0 : index
    %2 = vector.load %arg2[%c0_1, %c0_2] : memref<5x8xbf16, #tpu.memory_space<vmem>>, vector<5x8xbf16>
    %cst = arith.constant dense<0.000000e+00> : vector<5x256xf32>
    %3 = tpu.matmul %2, %1, %cst {dimension_numbers = #tpu.dot_dimension_numbers<[1], [0], [0], [1], [0, 0, 1, 1], [], []>} : vector<5x8xbf16>, vector<8x256xbf16>, vector<5x256xf32> -> vector<5x256xf32>
    %c0_3 = arith.constant 0 : index
    %c0_4 = arith.constant 0 : index
    %4 = vector.load %arg3[%c0_3, %c0_4] : memref<5x8xbf16, #tpu.memory_space<vmem>>, vector<5x8xbf16>
    %cst_5 = arith.constant dense<0.000000e+00> : vector<5x256xf32>
    %5 = tpu.matmul %4, %1, %cst_5 {dimension_numbers = #tpu.dot_dimension_numbers<[1], [0], [0], [1], [0, 0, 1, 1], [], []>} : vector<5x8xbf16>, vector<8x256xbf16>, vector<5x256xf32> -> vector<5x256xf32>
    %c0_6 = arith.constant 0 : index
    %c0_7 = arith.constant 0 : index
    %6 = vector.load %arg6[%c0_6, %c0_7] : memref<5x256xf32, #tpu.memory_space<vmem>>, vector<5x256xf32>
    %c0_8 = arith.constant 0 : index
    %c0_9 = arith.constant 0 : index
    %7 = vector.load %arg7[%c0_8, %c0_9] : memref<5x256xf32, #tpu.memory_space<vmem>>, vector<5x256xf32>
    %8 = arith.mulf %3, %6 : vector<5x256xf32>
    %9 = arith.mulf %5, %7 : vector<5x256xf32>
    %10 = arith.subf %8, %9 : vector<5x256xf32>
    %11 = arith.truncf %10 : vector<5x256xf32> to vector<5x256xbf16>
    %12 = arith.mulf %3, %7 : vector<5x256xf32>
    %13 = arith.mulf %5, %6 : vector<5x256xf32>
    %14 = arith.addf %12, %13 : vector<5x256xf32>
    %15 = arith.truncf %14 : vector<5x256xf32> to vector<5x256xbf16>
    %c0_10 = arith.constant 0 : index
    %c0_11 = arith.constant 0 : index
    %16 = vector.load %arg4[%c0_10, %c0_11] : memref<8x5xbf16, #tpu.memory_space<vmem>>, vector<8x5xbf16>
    %cst_12 = arith.constant dense<0.000000e+00> : vector<8x256xf32>
    %17 = tpu.matmul %16, %11, %cst_12 {dimension_numbers = #tpu.dot_dimension_numbers<[1], [0], [0], [1], [0, 0, 1, 1], [], []>} : vector<8x5xbf16>, vector<5x256xbf16>, vector<8x256xf32> -> vector<8x256xf32>
    %c0_13 = arith.constant 0 : index
    %c0_14 = arith.constant 0 : index
    %18 = vector.load %arg5[%c0_13, %c0_14] : memref<8x5xbf16, #tpu.memory_space<vmem>>, vector<8x5xbf16>
    %cst_15 = arith.constant dense<0.000000e+00> : vector<8x256xf32>
    %19 = tpu.matmul %18, %15, %cst_15 {dimension_numbers = #tpu.dot_dimension_numbers<[1], [0], [0], [1], [0, 0, 1, 1], [], []>} : vector<8x5xbf16>, vector<5x256xbf16>, vector<8x256xf32> -> vector<8x256xf32>
    %20 = arith.addf %17, %19 : vector<8x256xf32>
    %21 = arith.addf %20, %0 : vector<8x256xf32>
    %c0_16 = arith.constant 0 : index
    %c0_17 = arith.constant 0 : index
    %22 = vector.load %arg8[%c0_16, %c0_17] : memref<256x8xbf16, #tpu.memory_space<vmem>>, vector<256x8xbf16>
    %c0_18 = arith.constant 0 : index
    %c0_19 = arith.constant 0 : index
    %23 = vector.load %arg9[%c0_18, %c0_19] : memref<8x256xbf16, #tpu.memory_space<vmem>>, vector<8x256xbf16>
    %24 = arith.truncf %21 : vector<8x256xf32> to vector<8x256xbf16>
    %cst_20 = arith.constant dense<0.000000e+00> : vector<8x8xf32>
    %25 = tpu.matmul %24, %22, %cst_20 {dimension_numbers = #tpu.dot_dimension_numbers<[1], [0], [0], [1], [0, 0, 1, 1], [], []>} : vector<8x256xbf16>, vector<256x8xbf16>, vector<8x8xf32> -> vector<8x8xf32>
    %cst_21 = arith.constant 3.125000e-02 : f32
    %26 = vector.broadcast %cst_21 : f32 to vector<8x8xf32>
    %27 = arith.mulf %25, %26 : vector<8x8xf32>
    %28 = arith.truncf %27 : vector<8x8xf32> to vector<8x8xbf16>
    %cst_22 = arith.constant dense<0.000000e+00> : vector<8x256xf32>
    %29 = tpu.matmul %28, %23, %cst_22 {dimension_numbers = #tpu.dot_dimension_numbers<[1], [0], [0], [1], [0, 0, 1, 1], [], []>} : vector<8x8xbf16>, vector<8x256xbf16>, vector<8x256xf32> -> vector<8x256xf32>
    %30 = arith.subf %21, %29 : vector<8x256xf32>
    %31 = arith.mulf %30, %30 : vector<8x256xf32>
    %32 = arith.truncf %31 : vector<8x256xf32> to vector<8x256xbf16>
    %cst_23 = arith.constant dense<0.000000e+00> : vector<8x8xf32>
    %33 = tpu.matmul %32, %22, %cst_23 {dimension_numbers = #tpu.dot_dimension_numbers<[1], [0], [0], [1], [0, 0, 1, 1], [], []>} : vector<8x256xbf16>, vector<256x8xbf16>, vector<8x8xf32> -> vector<8x8xf32>
    %cst_24 = arith.constant 3.125000e-02 : f32
    %34 = vector.broadcast %cst_24 : f32 to vector<8x8xf32>
    %35 = arith.mulf %33, %34 : vector<8x8xf32>
    %36 = arith.truncf %35 : vector<8x8xf32> to vector<8x8xbf16>
    %cst_25 = arith.constant dense<0.000000e+00> : vector<8x256xf32>
    %37 = tpu.matmul %36, %23, %cst_25 {dimension_numbers = #tpu.dot_dimension_numbers<[1], [0], [0], [1], [0, 0, 1, 1], [], []>} : vector<8x8xbf16>, vector<8x256xbf16>, vector<8x256xf32> -> vector<8x256xf32>
    %cst_26 = arith.constant 9.99999996E-13 : f32
    %38 = vector.broadcast %cst_26 : f32 to vector<8x256xf32>
    %39 = arith.addf %37, %38 : vector<8x256xf32>
    %40 = math.rsqrt %39 : vector<8x256xf32>
    %41 = arith.mulf %30, %40 : vector<8x256xf32>
    %c0_27 = arith.constant 0 : index
    %c0_28 = arith.constant 0 : index
    %42 = vector.load %arg10[%c0_27, %c0_28] : memref<1x256xf32, #tpu.memory_space<vmem>>, vector<1x256xf32>
    %43 = vector.broadcast %42 : vector<1x256xf32> to vector<8x256xf32>
    %44 = arith.mulf %43, %41 : vector<8x256xf32>
    %c0_29 = arith.constant 0 : index
    %c0_30 = arith.constant 0 : index
    %45 = vector.load %arg11[%c0_29, %c0_30] : memref<1x256xf32, #tpu.memory_space<vmem>>, vector<1x256xf32>
    %46 = vector.broadcast %45 : vector<1x256xf32> to vector<8x256xf32>
    %47 = arith.addf %44, %46 : vector<8x256xf32>
    %c0_31 = arith.constant 0 : index
    %c0_32 = arith.constant 0 : index
    %48 = vector.load %arg12[%c0_31, %c0_32] : memref<8x256xf32, #tpu.memory_space<vmem>>, vector<8x256xf32>
    tpu.vector_store %arg12[%c0_31, %c0_32], %47 {strides = array<i32>} : memref<8x256xf32, #tpu.memory_space<vmem>>, vector<8x256xf32>,
    return
  }
  func.func @transform_0(%arg0: i32) -> (i32, i32) {
    %c0_i32 = arith.constant 0 : i32
    %c0_i32_0 = arith.constant 0 : i32
    return %c0_i32, %arg0 : i32, i32
  }
  func.func @transform_1(%arg0: i32) -> (i32, i32) {
    %c0_i32 = arith.constant 0 : i32
    %c0_i32_0 = arith.constant 0 : i32
    %c0_i32_1 = arith.constant 0 : i32
    return %c0_i32, %c0_i32_0 : i32, i32
  }
  func.func @transform_2(%arg0: i32) -> (i32, i32) {
    %c0_i32 = arith.constant 0 : i32
    %c0_i32_0 = arith.constant 0 : i32
    %c0_i32_1 = arith.constant 0 : i32
    return %c0_i32, %c0_i32_0 : i32, i32
  }
  func.func @transform_3(%arg0: i32) -> (i32, i32) {
    %c0_i32 = arith.constant 0 : i32
    %c0_i32_0 = arith.constant 0 : i32
    %c0_i32_1 = arith.constant 0 : i32
    return %c0_i32, %c0_i32_0 : i32, i32
  }
  func.func @transform_4(%arg0: i32) -> (i32, i32) {
    %c0_i32 = arith.constant 0 : i32
    %c0_i32_0 = arith.constant 0 : i32
    %c0_i32_1 = arith.constant 0 : i32
    return %c0_i32, %c0_i32_0 : i32, i32
  }
  func.func @transform_5(%arg0: i32) -> (i32, i32) {
    %c0_i32 = arith.constant 0 : i32
    %c0_i32_0 = arith.constant 0 : i32
    %c0_i32_1 = arith.constant 0 : i32
    return %c0_i32, %c0_i32_0 : i32, i32
  }
  func.func @transform_6(%arg0: i32) -> (i32, i32) {
    %c0_i32 = arith.constant 0 : i32
    %c0_i32_0 = arith.constant 0 : i32
    %c0_i32_1 = arith.constant 0 : i32
    return %c0_i32, %c0_i32_0 : i32, i32
  }
  func.func @transform_7(%arg0: i32) -> (i32, i32) {
    %c0_i32 = arith.constant 0 : i32
    %c0_i32_0 = arith.constant 0 : i32
    %c0_i32_1 = arith.constant 0 : i32
    return %c0_i32, %c0_i32_0 : i32, i32
  }
  func.func @transform_8(%arg0: i32) -> (i32, i32) {
    %c0_i32 = arith.constant 0 : i32
    %c0_i32_0 = arith.constant 0 : i32
    %c0_i32_1 = arith.constant 0 : i32
    return %c0_i32, %c0_i32_0 : i32, i32
  }
  func.func @transform_9(%arg0: i32) -> (i32, i32) {
    %c0_i32 = arith.constant 0 : i32
    %c0_i32_0 = arith.constant 0 : i32
    %c0_i32_1 = arith.constant 0 : i32
    return %c0_i32, %c0_i32_0 : i32, i32
  }
  func.func @transform_10(%arg0: i32) -> (i32, i32) {
    %c0_i32 = arith.constant 0 : i32
    %c0_i32_0 = arith.constant 0 : i32
    %c0_i32_1 = arith.constant 0 : i32
    return %c0_i32, %c0_i32_0 : i32, i32
  }
  func.func @transform_11(%arg0: i32) -> (i32, i32) {
    %c0_i32 = arith.constant 0 : i32
    %c0_i32_0 = arith.constant 0 : i32
    return %c0_i32, %arg0 : i32, i32
  }
}

</mosaic_0001>

<llo_original>
// kernel: tpu_custom_call.1
$region0: #{tpu_custom_call.1}
  #allocation0 [shape = 'u32[]', space=smem, size = 0x4, offset = 0x4, fixed_abs, tag = 'smem constant byte address 0x4 - core index']
  #allocation1 [shape = 'u32[72,128]{1,0:T(1,128)}', space=vmem, size = 0x9000, scoped, tag = 'internal scratch']
  %s0 = inlined_call_operand.vmem [shape: f32[8,256], index: 0, kind: input, shape index: {}]
  %s1 = inlined_call_operand.vmem [shape: bf16[5,8], index: 1, kind: input, shape index: {}]
  %s2 = inlined_call_operand.vmem [shape: bf16[5,8], index: 2, kind: input, shape index: {}]
  %s3 = inlined_call_operand.vmem [shape: bf16[8,5], index: 3, kind: input, shape index: {}]
  %s4 = inlined_call_operand.vmem [shape: bf16[8,5], index: 4, kind: input, shape index: {}]
  %s5 = inlined_call_operand.vmem [shape: f32[5,256], index: 5, kind: input, shape index: {}]
  %s6 = inlined_call_operand.vmem [shape: f32[5,256], index: 6, kind: input, shape index: {}]
  %s7 = inlined_call_operand.vmem [shape: bf16[256,8], index: 7, kind: input, shape index: {}]
  %s8 = inlined_call_operand.vmem [shape: bf16[8,256], index: 8, kind: input, shape index: {}]
  %s9 = inlined_call_operand.vmem [shape: f32[1,256], index: 9, kind: input, shape index: {}]
  %s10 = inlined_call_operand.vmem [shape: f32[1,256], index: 10, kind: input, shape index: {}]
  %s11 = inlined_call_operand.hbm [shape: f32[8,256], index: 11, kind: output, shape index: {}]
  %s12 = sld [smem:[#allocation0]]
  $region54: #{tpu_custom_call.1} parent=0
    _
  %s14 = ssub.s32 1, %s12
  %s15 = scalar_select 0, %s14, %s12
  $region1: #{tpu_custom_call.1} parent=0
    #allocation2 [shape = 'u8[8192]{0}', space=vmem, size = 0x2000, scoped, tag = 'output window, operand 0, single buffered']
    #allocation3 [shape = 's32[1]{0}', space=sflag, size = 0x4, scoped, tag = 'scoped memory for tpu_custom_call.1']
    %16 = vsyncpa [#allocation3], 0
    // Predicated region
    $region2: #{tpu_custom_call.1} parent=1 // pred_check
      _
    $region3: #{tpu_custom_call.1} parent=1 // pred_check_branch
      %18 = sbr.rel (0) target = $region5
    $region4: #{tpu_custom_call.1} parent=1 // pred_region
      _
    $region5: #{tpu_custom_call.1} parent=1 // pred_fallthru
      _
    // Predicated region
    $region6: #{tpu_custom_call.1} parent=1 // pred_check
      _
    $region7: #{tpu_custom_call.1} parent=1 // pred_check_branch
      %20 = sbr.rel (0) target = $region9
    $region8: #{tpu_custom_call.1} parent=1 // pred_region
      _
    $region9: #{tpu_custom_call.1} parent=1 // pred_fallthru
      _
    // Predicated region
    $region10: #{tpu_custom_call.1} parent=1 // pred_check
      _
    $region11: #{tpu_custom_call.1} parent=1 // pred_check_branch
      %22 = sbr.rel (0) target = $region13
    $region12: #{tpu_custom_call.1} parent=1 // pred_region
      _
    $region13: #{tpu_custom_call.1} parent=1 // pred_fallthru
      _
    // Predicated region
    $region14: #{tpu_custom_call.1} parent=1 // pred_check
      _
    $region15: #{tpu_custom_call.1} parent=1 // pred_check_branch
      %24 = sbr.rel (0) target = $region17
    $region16: #{tpu_custom_call.1} parent=1 // pred_region
      _
    $region17: #{tpu_custom_call.1} parent=1 // pred_fallthru
      _
    // Predicated region
    $region18: #{tpu_custom_call.1} parent=1 // pred_check
      _
    $region19: #{tpu_custom_call.1} parent=1 // pred_check_branch
      %26 = sbr.rel (0) target = $region21
    $region20: #{tpu_custom_call.1} parent=1 // pred_region
      _
    $region21: #{tpu_custom_call.1} parent=1 // pred_fallthru
      _
    // Predicated region
    $region22: #{tpu_custom_call.1} parent=1 // pred_check
      _
    $region23: #{tpu_custom_call.1} parent=1 // pred_check_branch
      %28 = sbr.rel (0) target = $region25
    $region24: #{tpu_custom_call.1} parent=1 // pred_region
      _
    $region25: #{tpu_custom_call.1} parent=1 // pred_fallthru
      _
    // Predicated region
    $region26: #{tpu_custom_call.1} parent=1 // pred_check
      _
    $region27: #{tpu_custom_call.1} parent=1 // pred_check_branch
      %30 = sbr.rel (0) target = $region29
    $region28: #{tpu_custom_call.1} parent=1 // pred_region
      _
    $region29: #{tpu_custom_call.1} parent=1 // pred_fallthru
      _
    // Predicated region
    $region30: #{tpu_custom_call.1} parent=1 // pred_check
      _
    $region31: #{tpu_custom_call.1} parent=1 // pred_check_branch
      %32 = sbr.rel (0) target = $region33
    $region32: #{tpu_custom_call.1} parent=1 // pred_region
      _
    $region33: #{tpu_custom_call.1} parent=1 // pred_fallthru
      _
    // Predicated region
    $region34: #{tpu_custom_call.1} parent=1 // pred_check
      _
    $region35: #{tpu_custom_call.1} parent=1 // pred_check_branch
      %34 = sbr.rel (0) target = $region37
    $region36: #{tpu_custom_call.1} parent=1 // pred_region
      _
    $region37: #{tpu_custom_call.1} parent=1 // pred_fallthru
      _
    // Predicated region
    $region38: #{tpu_custom_call.1} parent=1 // pred_check
      _
    $region39: #{tpu_custom_call.1} parent=1 // pred_check_branch
      %36 = sbr.rel (0) target = $region41
    $region40: #{tpu_custom_call.1} parent=1 // pred_region
      _
    $region41: #{tpu_custom_call.1} parent=1 // pred_fallthru
      _
    // Predicated region
    $region42: #{tpu_custom_call.1} parent=1 // pred_check
      _
    $region43: #{tpu_custom_call.1} parent=1 // pred_check_branch
      %38 = sbr.rel (0) target = $region45
    $region44: #{tpu_custom_call.1} parent=1 // pred_region
      _
    $region45: #{tpu_custom_call.1} parent=1 // pred_fallthru
      _
    %v40 = vld [vmem:[%s0] sm:$0xff]
    %v41 = vld [vmem:[%s0 + $0x8] sm:$0xff]
    %v42 = vpack.c.bf16 %v40, %v40
    %v43 = vpack.c.bf16 %v41, %v41
    %v44 = vld [vmem:[%s1] sm:$0x7]
    %vm45 = vcmask 64512
    %v47 = vsel %vm45, %v44, 0
    %vm49 = vcmask 1043456
    %v51 = vsel %vm49, %v42, 0
    %v54 = vsel %vm49, %v43, 0
    %56 = vmatpush.bf16.msra.mxu0 0
    %57 = vmatpush.bf16.msra.mxu0 0
    %58 = vmatpush.bf16.msra.mxu0 0
    %59 = vmatpush.bf16.msra.mxu0 0
    %60 = vmatpush.bf16.msra.mxu0 0
    %61 = vmatpush.bf16.msra.mxu0 0
    %62 = vmatpush.bf16.msra.mxu0 0
    %63 = vmatpush.bf16.msra.mxu0 %v51
    %64 = vmatmul.bf16.gmra.mxu0 %v47
    %v65 = vpop.f32.mrf.mxu0
    %v66 = vadd.f32 0.0, %v65
    %v67 = vpop.f32.mrf.mxu0
    %68 = vdwg.mxu0
    %69 = vmatpush.bf16.msra.mxu0 0
    %70 = vmatpush.bf16.msra.mxu0 0
    %71 = vmatpush.bf16.msra.mxu0 0
    %72 = vmatpush.bf16.msra.mxu0 0
    %73 = vmatpush.bf16.msra.mxu0 0
    %74 = vmatpush.bf16.msra.mxu0 0
    %75 = vmatpush.bf16.msra.mxu0 0
    %76 = vmatpush.bf16.msra.mxu0 %v54
    %77 = vmatmul.bf16.gmra.mxu0 %v47
    %v78 = vpop.f32.mrf.mxu0
    %v79 = vadd.f32 0.0, %v78
    %v80 = vpop.f32.mrf.mxu0
    %81 = vdwg.mxu0
    %v82 = vld [vmem:[%s2] sm:$0x7]
    %v84 = vsel %vm45, %v82, 0
    %86 = vmatpush.bf16.msra.mxu0 0
    %87 = vmatpush.bf16.msra.mxu0 0
    %88 = vmatpush.bf16.msra.mxu0 0
    %89 = vmatpush.bf16.msra.mxu0 0
    %90 = vmatpush.bf16.msra.mxu0 0
    %91 = vmatpush.bf16.msra.mxu0 0
    %92 = vmatpush.bf16.msra.mxu0 0
    %93 = vmatpush.bf16.msra.mxu0 %v51
    %94 = vmatmul.bf16.gmra.mxu0 %v84
    %v95 = vpop.f32.mrf.mxu0
    %v96 = vadd.f32 0.0, %v95
    %v97 = vpop.f32.mrf.mxu0
    %98 = vdwg.mxu0
    %99 = vmatpush.bf16.msra.mxu0 0
    %100 = vmatpush.bf16.msra.mxu0 0
    %101 = vmatpush.bf16.msra.mxu0 0
    %102 = vmatpush.bf16.msra.mxu0 0
    %103 = vmatpush.bf16.msra.mxu0 0
    %104 = vmatpush.bf16.msra.mxu0 0
    %105 = vmatpush.bf16.msra.mxu0 0
    %106 = vmatpush.bf16.msra.mxu0 %v54
    %107 = vmatmul.bf16.gmra.mxu0 %v84
    %v108 = vpop.f32.mrf.mxu0
    %v109 = vadd.f32 0.0, %v108
    %v110 = vpop.f32.mrf.mxu0
    %111 = vdwg.mxu0
    %v112 = vld [vmem:[%s5] sm:$0x1f]
    %v113 = vld [vmem:[%s5 + $0x8] sm:$0x1f]
    %v114 = vld [vmem:[%s6] sm:$0x1f]
    %v115 = vld [vmem:[%s6 + $0x8] sm:$0x1f]
    %v116 = vmul.f32 %v66, %v112
    %v117 = vmul.f32 %v79, %v113
    %v118 = vmul.f32 %v96, %v114
    %v119 = vmul.f32 %v109, %v115
    %v120 = vsub.f32 %v116, %v118
    %v121 = vsub.f32 %v117, %v119
    %v122 = vpack.c.bf16 %v120, %v120
    %v123 = vpack.c.bf16 %v121, %v121
    %v124 = vmul.f32 %v66, %v114
    %v125 = vmul.f32 %v79, %v115
    %v126 = vmul.f32 %v96, %v112
    %v127 = vmul.f32 %v109, %v113
    %v128 = vadd.f32 %v124, %v126
    %v129 = vadd.f32 %v125, %v127
    %v130 = vpack.c.bf16 %v128, %v128
    %v131 = vpack.c.bf16 %v129, %v129
    %v132 = vld [vmem:[%s3] sm:$0xf]
    %v133 = vld [vmem:[%s4] sm:$0xf]
    %vm134 = vcmask 39936
    %v136 = vsel %vm134, %v133, 0
    %vm138 = vcmask 1041408
    %vm139 = vcmask 1042432
    %v140 = vsel %vm138, 4294967295, 65535
    %v141 = vsel %vm139, %v140, 0
    %v143 = vand.u32 %v130, %v141
    %v146 = vand.u32 %v131, %v141
    %148 = vmatpush.bf16.msra.mxu0 0
    %149 = vmatpush.bf16.msra.mxu0 0
    %150 = vmatpush.bf16.msra.mxu0 0
    %151 = vmatpush.bf16.msra.mxu0 0
    %152 = vmatpush.bf16.msra.mxu0 0
    %153 = vmatpush.bf16.msra.mxu0 0
    %154 = vmatpush.bf16.msra.mxu0 0
    %155 = vmatpush.bf16.msra.mxu0 %v143
    %156 = vmatmul.bf16.gmra.mxu0 %v136
    %v157 = vpop.f32.mrf.mxu0
    %v158 = vadd.f32 0.0, %v157
    %v159 = vpop.f32.mrf.mxu0
    %160 = vdwg.mxu0
    %161 = vmatpush.bf16.msra.mxu0 0
    %162 = vmatpush.bf16.msra.mxu0 0
    %163 = vmatpush.bf16.msra.mxu0 0
    %164 = vmatpush.bf16.msra.mxu0 0
    %165 = vmatpush.bf16.msra.mxu0 0
    %166 = vmatpush.bf16.msra.mxu0 0
    %167 = vmatpush.bf16.msra.mxu0 0
    %168 = vmatpush.bf16.msra.mxu0 %v146
    %169 = vmatmul.bf16.gmra.mxu0 %v136
    %v170 = vpop.f32.mrf.mxu0
    %v171 = vadd.f32 0.0, %v170
    %v172 = vpop.f32.mrf.mxu0
    %173 = vdwg.mxu0
    %v175 = vsel %vm134, %v132, 0
    %v178 = vand.u32 %v122, %v141
    %v181 = vand.u32 %v123, %v141
    %183 = vmatpush.bf16.msra.mxu0 0
    %184 = vmatpush.bf16.msra.mxu0 0
    %185 = vmatpush.bf16.msra.mxu0 0
    %186 = vmatpush.bf16.msra.mxu0 0
    %187 = vmatpush.bf16.msra.mxu0 0
    %188 = vmatpush.bf16.msra.mxu0 0
    %189 = vmatpush.bf16.msra.mxu0 0
    %190 = vmatpush.bf16.msra.mxu0 %v178
    %191 = vmatmul.bf16.gmra.mxu0 %v175
    %v192 = vpop.f32.mrf.mxu0
    %v193 = vadd.f32 %v158, %v192
    %v194 = vpop.f32.mrf.mxu0
    %195 = vdwg.mxu0
    %196 = vmatpush.bf16.msra.mxu0 0
    %197 = vmatpush.bf16.msra.mxu0 0
    %198 = vmatpush.bf16.msra.mxu0 0
    %199 = vmatpush.bf16.msra.mxu0 0
    %200 = vmatpush.bf16.msra.mxu0 0
    %201 = vmatpush.bf16.msra.mxu0 0
    %202 = vmatpush.bf16.msra.mxu0 0
    %203 = vmatpush.bf16.msra.mxu0 %v181
    %204 = vmatmul.bf16.gmra.mxu0 %v175
    %v205 = vpop.f32.mrf.mxu0
    %v206 = vadd.f32 %v171, %v205
    %v207 = vpop.f32.mrf.mxu0
    %208 = vdwg.mxu0
    %v209 = vadd.f32 %v193, %v40
    %v210 = vadd.f32 %v206, %v41
    %v211 = vld [vmem:[%s7] sm:$0xf]
    %v212 = vld [vmem:[%s7 + $0x4] sm:$0xf]
    %v213 = vld [vmem:[%s7 + $0x8] sm:$0xf]
    %v214 = vld [vmem:[%s7 + $0xc] sm:$0xf]
    %v215 = vld [vmem:[%s7 + $0x10] sm:$0xf]
    %v216 = vld [vmem:[%s7 + $0x14] sm:$0xf]
    %v217 = vld [vmem:[%s7 + $0x18] sm:$0xf]
    %v218 = vld [vmem:[%s7 + $0x1c] sm:$0xf]
    %v219 = vld [vmem:[%s7 + $0x20] sm:$0xf]
    %v220 = vld [vmem:[%s7 + $0x24] sm:$0xf]
    %v221 = vld [vmem:[%s7 + $0x28] sm:$0xf]
    %v222 = vld [vmem:[%s7 + $0x2c] sm:$0xf]
    %v223 = vld [vmem:[%s7 + $0x30] sm:$0xf]
    %v224 = vld [vmem:[%s7 + $0x34] sm:$0xf]
    %v225 = vld [vmem:[%s7 + $0x38] sm:$0xf]
    %v226 = vld [vmem:[%s7 + $0x3c] sm:$0xf]
    %v227 = vld [vmem:[%s7 + $0x40] sm:$0xf]
    %v228 = vld [vmem:[%s7 + $0x44] sm:$0xf]
    %v229 = vld [vmem:[%s7 + $0x48] sm:$0xf]
    %v230 = vld [vmem:[%s7 + $0x4c] sm:$0xf]
    %v231 = vld [vmem:[%s7 + $0x50] sm:$0xf]
    %v232 = vld [vmem:[%s7 + $0x54] sm:$0xf]
    %v233 = vld [vmem:[%s7 + $0x58] sm:$0xf]
    %v234 = vld [vmem:[%s7 + $0x5c] sm:$0xf]
    %v235 = vld [vmem:[%s7 + $0x60] sm:$0xf]
    %v236 = vld [vmem:[%s7 + $0x64] sm:$0xf]
    %v237 = vld [vmem:[%s7 + $0x68] sm:$0xf]
    %v238 = vld [vmem:[%s7 + $0x6c] sm:$0xf]
    %v239 = vld [vmem:[%s7 + $0x70] sm:$0xf]
    %v240 = vld [vmem:[%s7 + $0x74] sm:$0xf]
    %v241 = vld [vmem:[%s7 + $0x78] sm:$0xf]
    %v242 = vld [vmem:[%s7 + $0x7c] sm:$0xf]
    %v243 = vld [vmem:[%s8] sm:$0xff]
    %v244 = vpack.c.bf16 %v209, %v209
    %v245 = vpack.c.bf16 %v210, %v210
    %v278 = vunpack.c.l.b16 %v211
    %v279 = vunpack.c.l.b16 %v212
    %v280 = vunpack.c.l.b16 %v213
    %v281 = vunpack.c.l.b16 %v214
    %v282 = vunpack.c.l.b16 %v215
    %v283 = vunpack.c.l.b16 %v216
    %v284 = vunpack.c.l.b16 %v217
    %v285 = vunpack.c.l.b16 %v218
    %v286 = vunpack.c.l.b16 %v219
    %v287 = vunpack.c.l.b16 %v220
    %v288 = vunpack.c.l.b16 %v221
    %v289 = vunpack.c.l.b16 %v222
    %v290 = vunpack.c.l.b16 %v223
    %v291 = vunpack.c.l.b16 %v224
    %v292 = vunpack.c.l.b16 %v225
    %v293 = vunpack.c.l.b16 %v226
    %v294 = vunpack.c.l.b16 %v227
    %v295 = vunpack.c.l.b16 %v228
    %v296 = vunpack.c.l.b16 %v229
    %v297 = vunpack.c.l.b16 %v230
    %v298 = vunpack.c.l.b16 %v231
    %v299 = vunpack.c.l.b16 %v232
    %v300 = vunpack.c.l.b16 %v233
    %v301 = vunpack.c.l.b16 %v234
    %v302 = vunpack.c.l.b16 %v235
    %v303 = vunpack.c.l.b16 %v236
    %v304 = vunpack.c.l.b16 %v237
    %v305 = vunpack.c.l.b16 %v238
    %v306 = vunpack.c.l.b16 %v239
    %v307 = vunpack.c.l.b16 %v240
    %v308 = vunpack.c.l.b16 %v241
    %v309 = vunpack.c.l.b16 %v242
    %v310 = vpack.c.b16 %v279, %v278
    %v311 = vpack.c.b16 %v281, %v280
    %v312 = vpack.c.b16 %v283, %v282
    %v313 = vpack.c.b16 %v285, %v284
    %v314 = vpack.c.b16 %v287, %v286
    %v315 = vpack.c.b16 %v289, %v288
    %v316 = vpack.c.b16 %v291, %v290
    %v317 = vpack.c.b16 %v293, %v292
    %v318 = vpack.c.b16 %v295, %v294
    %v319 = vpack.c.b16 %v297, %v296
    %v320 = vpack.c.b16 %v299, %v298
    %v321 = vpack.c.b16 %v301, %v300
    %v322 = vpack.c.b16 %v303, %v302
    %v323 = vpack.c.b16 %v305, %v304
    %v324 = vpack.c.b16 %v307, %v306
    %v325 = vpack.c.b16 %v309, %v308
    %342 = vmatpush.bf16.msra.mxu0 %v317
    %343 = vmatpush.bf16.msra.mxu0 %v316
    %344 = vmatpush.bf16.msra.mxu0 %v315
    %345 = vmatpush.bf16.msra.mxu0 %v314
    %346 = vmatpush.bf16.msra.mxu0 %v313
    %347 = vmatpush.bf16.msra.mxu0 %v312
    %348 = vmatpush.bf16.msra.mxu0 %v311
    %349 = vmatpush.bf16.msra.mxu0 %v310
    %350 = vmatmul.bf16.gmra.mxu0 %v244
    %v351 = vpop.f32.mrf.mxu0
    %v352 = vadd.f32 0.0, %v351
    %v353 = vpop.f32.mrf.mxu0
    %354 = vdwg.mxu0
    %355 = vmatpush.bf16.msra.mxu0 %v325
    %356 = vmatpush.bf16.msra.mxu0 %v324
    %357 = vmatpush.bf16.msra.mxu0 %v323
    %358 = vmatpush.bf16.msra.mxu0 %v322
    %359 = vmatpush.bf16.msra.mxu0 %v321
    %360 = vmatpush.bf16.msra.mxu0 %v320
    %361 = vmatpush.bf16.msra.mxu0 %v319
    %362 = vmatpush.bf16.msra.mxu0 %v318
    %363 = vmatmul.bf16.gmra.mxu0 %v245
    %v364 = vpop.f32.mrf.mxu0
    %v365 = vadd.f32 %v352, %v364
    %v366 = vpop.f32.mrf.mxu0
    %367 = vdwg.mxu0
    %v368 = vmul.f32 %v365, 0.03125
    %v369 = vpack.c.bf16 %v368, %v368
    %v371 = vunpack.c.l.b16 %v243
    %v372 = vunpack.c.h.b16 %v243
    %v373 = vpack.c.b16 %v371, %v371
    %v374 = vpack.c.b16 %v372, %v372
    %v376 = vsel %vm45, %v369, 0
    %v379 = vsel %vm49, %v373, 0
    %v382 = vsel %vm49, %v374, 0
    %384 = vmatpush.bf16.msra.mxu0 0
    %385 = vmatpush.bf16.msra.mxu0 0
    %386 = vmatpush.bf16.msra.mxu0 0
    %387 = vmatpush.bf16.msra.mxu0 0
    %388 = vmatpush.bf16.msra.mxu0 0
    %389 = vmatpush.bf16.msra.mxu0 0
    %390 = vmatpush.bf16.msra.mxu0 0
    %391 = vmatpush.bf16.msra.mxu0 %v379
    %392 = vmatmul.bf16.gmra.mxu0 %v376
    %v393 = vpop.f32.mrf.mxu0
    %v394 = vadd.f32 0.0, %v393
    %v395 = vpop.f32.mrf.mxu0
    %396 = vdwg.mxu0
    %397 = vmatpush.bf16.msra.mxu0 0
    %398 = vmatpush.bf16.msra.mxu0 0
    %399 = vmatpush.bf16.msra.mxu0 0
    %400 = vmatpush.bf16.msra.mxu0 0
    %401 = vmatpush.bf16.msra.mxu0 0
    %402 = vmatpush.bf16.msra.mxu0 0
    %403 = vmatpush.bf16.msra.mxu0 0
    %404 = vmatpush.bf16.msra.mxu0 %v382
    %405 = vmatmul.bf16.gmra.mxu0 %v376
    %v406 = vpop.f32.mrf.mxu0
    %v407 = vadd.f32 0.0, %v406
    %v408 = vpop.f32.mrf.mxu0
    %409 = vdwg.mxu0
    %v410 = vsub.f32 %v209, %v394
    %v411 = vsub.f32 %v210, %v407
    %v412 = vmul.f32 %v410, %v410
    %v413 = vmul.f32 %v411, %v411
    %v414 = vpack.c.bf16 %v412, %v412
    %v415 = vpack.c.bf16 %v413, %v413
    %416 = vmatpush.bf16.msra.mxu0 %v317
    %417 = vmatpush.bf16.msra.mxu0 %v316
    %418 = vmatpush.bf16.msra.mxu0 %v315
    %419 = vmatpush.bf16.msra.mxu0 %v314
    %420 = vmatpush.bf16.msra.mxu0 %v313
    %421 = vmatpush.bf16.msra.mxu0 %v312
    %422 = vmatpush.bf16.msra.mxu0 %v311
    %423 = vmatpush.bf16.msra.mxu0 %v310
    %424 = vmatmul.bf16.gmra.mxu0 %v414
    %v425 = vpop.f32.mrf.mxu0
    %v426 = vadd.f32 0.0, %v425
    %v427 = vpop.f32.mrf.mxu0
    %428 = vdwg.mxu0
    %429 = vmatpush.bf16.msra.mxu0 %v325
    %430 = vmatpush.bf16.msra.mxu0 %v324
    %431 = vmatpush.bf16.msra.mxu0 %v323
    %432 = vmatpush.bf16.msra.mxu0 %v322
    %433 = vmatpush.bf16.msra.mxu0 %v321
    %434 = vmatpush.bf16.msra.mxu0 %v320
    %435 = vmatpush.bf16.msra.mxu0 %v319
    %436 = vmatpush.bf16.msra.mxu0 %v318
    %437 = vmatmul.bf16.gmra.mxu0 %v415
    %v438 = vpop.f32.mrf.mxu0
    %v439 = vadd.f32 %v426, %v438
    %v440 = vpop.f32.mrf.mxu0
    %441 = vdwg.mxu0
    %v442 = vmul.f32 %v439, 0.03125
    %v443 = vpack.c.bf16 %v442, %v442
    %v445 = vsel %vm45, %v443, 0
    %447 = vmatpush.bf16.msra.mxu0 0
    %448 = vmatpush.bf16.msra.mxu0 0
    %449 = vmatpush.bf16.msra.mxu0 0
    %450 = vmatpush.bf16.msra.mxu0 0
    %451 = vmatpush.bf16.msra.mxu0 0
    %452 = vmatpush.bf16.msra.mxu0 0
    %453 = vmatpush.bf16.msra.mxu0 0
    %454 = vmatpush.bf16.msra.mxu0 %v379
    %455 = vmatmul.bf16.gmra.mxu0 %v445
    %v456 = vpop.f32.mrf.mxu0
    %v457 = vadd.f32 1e-12, %v456
    %v458 = vpop.f32.mrf.mxu0
    %459 = vdwg.mxu0
    %460 = vmatpush.bf16.msra.mxu0 0
    %461 = vmatpush.bf16.msra.mxu0 0
    %462 = vmatpush.bf16.msra.mxu0 0
    %463 = vmatpush.bf16.msra.mxu0 0
    %464 = vmatpush.bf16.msra.mxu0 0
    %465 = vmatpush.bf16.msra.mxu0 0
    %466 = vmatpush.bf16.msra.mxu0 0
    %467 = vmatpush.bf16.msra.mxu0 %v382
    %468 = vmatmul.bf16.gmra.mxu0 %v445
    %v469 = vpop.f32.mrf.mxu0
    %v470 = vadd.f32 1e-12, %v469
    %v471 = vpop.f32.mrf.mxu0
    %472 = vdwg.mxu0
    %v473 = vrsqrt.pop %v457
    %v474 = vmul.f32 %v473, %v457
    %v475 = vmul.f32 %v474, %v473
    %v476 = vmul.f32 0.5, %v475
    %v477 = vsub.f32 1.5, %v476
    %v478 = vmul.f32 %v473, %v477
    %vm479 = vweird.f32 %v457
    %vm480 = vweird.f32 %v473
    %vm481 = vmor %vm479, %vm480
    %v482 = vsel %vm481, %v473, %v478
    %v483 = vrsqrt.pop %v470
    %v484 = vmul.f32 %v483, %v470
    %v485 = vmul.f32 %v484, %v483
    %v486 = vmul.f32 0.5, %v485
    %v487 = vsub.f32 1.5, %v486
    %v488 = vmul.f32 %v483, %v487
    %vm489 = vweird.f32 %v470
    %vm490 = vweird.f32 %v483
    %vm491 = vmor %vm489, %vm490
    %v492 = vsel %vm491, %v483, %v488
    %v493 = vmul.f32 %v410, %v482
    %v494 = vmul.f32 %v411, %v492
    %v495 = vld [vmem:[%s9] sm:$0x3]
    %v497 = vperm.slane %v495, 0
    %v498 = vperm.slane %v495, 1
    %v501 = vmul.f32 %v497, %v493
    %v502 = vmul.f32 %v498, %v494
    %v503 = vld [vmem:[%s10] sm:$0x3]
    %v505 = vperm.slane %v503, 0
    %v506 = vperm.slane %v503, 1
    %v509 = vadd.f32 %v501, %v505
    %v510 = vadd.f32 %v502, %v506
    %511 = vst [vmem:[#allocation2] sm:$0xff] %v509
    %512 = vst [vmem:[#allocation2 + $0x8] sm:$0xff] %v510
    // Predicated region
    $region46: #{tpu_custom_call.1} parent=1 // pred_check
      _
    $region47: #{tpu_custom_call.1} parent=1 // pred_check_branch
      %514 = sbr.rel (0) target = $region49
    $region48: #{tpu_custom_call.1} parent=1 // pred_region
      %516 = vsyncadd [#allocation3], 0
      %s518 = sshll.u32 [#allocation2], 4
      %s519 = int_to_ptr.vmem [resolvable:$true] %s518
      %s520 = sshll.u32 %s11, 4
      %s521 = int_to_ptr.hbm [resolvable:$true] %s520
      %523 = dma.vmem_to_hbm [thread:$0]  %s519, 256, %s521, [#allocation3]
    $region49: #{tpu_custom_call.1} parent=1 // pred_fallthru
      _
    // Predicated region
    $region50: #{tpu_custom_call.1} parent=1 // pred_check
      _
    $region51: #{tpu_custom_call.1} parent=1 // pred_check_branch
      %525 = sbr.rel (0) target = $region53
    $region52: #{tpu_custom_call.1} parent=1 // pred_region
      %527 = dma.done [#allocation3], 256
    $region53: #{tpu_custom_call.1} parent=1 // pred_fallthru
      _
    %528 = vsyncpa [#allocation3], 1

// kernel: tpu_custom_call.1
$region0: #{tpu_custom_call.1}
  #allocation0 [shape = 'u32[]', space=smem, size = 0x4, offset = 0x4, fixed_abs, tag = 'smem constant byte address 0x4 - core index']
  #allocation1 [shape = 'u32[72,128]{1,0:T(1,128)}', space=vmem, size = 0x9000, scoped, tag = 'internal scratch']
  %s0 = inlined_call_operand.vmem [shape: f32[8,256], index: 0, kind: input, shape index: {}]
  %s1 = inlined_call_operand.vmem [shape: bf16[5,8], index: 1, kind: input, shape index: {}]
  %s2 = inlined_call_operand.vmem [shape: bf16[5,8], index: 2, kind: input, shape index: {}]
  %s3 = inlined_call_operand.vmem [shape: bf16[8,5], index: 3, kind: input, shape index: {}]
  %s4 = inlined_call_operand.vmem [shape: bf16[8,5], index: 4, kind: input, shape index: {}]
  %s5 = inlined_call_operand.vmem [shape: f32[5,256], index: 5, kind: input, shape index: {}]
  %s6 = inlined_call_operand.vmem [shape: f32[5,256], index: 6, kind: input, shape index: {}]
  %s7 = inlined_call_operand.vmem [shape: bf16[256,8], index: 7, kind: input, shape index: {}]
  %s8 = inlined_call_operand.vmem [shape: bf16[8,256], index: 8, kind: input, shape index: {}]
  %s9 = inlined_call_operand.vmem [shape: f32[1,256], index: 9, kind: input, shape index: {}]
  %s10 = inlined_call_operand.vmem [shape: f32[1,256], index: 10, kind: input, shape index: {}]
  %s11 = inlined_call_operand.hbm [shape: f32[8,256], index: 11, kind: output, shape index: {}]
  %s12 = sld [smem:[#allocation0]]
  $region54: #{tpu_custom_call.1} parent=0
    _
  %s14 = ssub.s32 1, %s12
  %s15 = scalar_select 0, %s14, %s12
  $region1: #{tpu_custom_call.1} parent=0
    #allocation2 [shape = 'u8[8192]{0}', space=vmem, size = 0x2000, scoped, tag = 'output window, operand 0, single buffered']
    #allocation3 [shape = 's32[1]{0}', space=sflag, size = 0x4, scoped, tag = 'scoped memory for tpu_custom_call.1']
    %16 = vsyncpa [#allocation3], 0
    // Predicated region
    $region2: #{tpu_custom_call.1} parent=1 // pred_check
      _
    $region3: #{tpu_custom_call.1} parent=1 // pred_check_branch
      %18 = sbr.rel (0) target = $region5
    $region4: #{tpu_custom_call.1} parent=1 // pred_region
      _
    $region5: #{tpu_custom_call.1} parent=1 // pred_fallthru
      _
    // Predicated region
    $region6: #{tpu_custom_call.1} parent=1 // pred_check
      _
    $region7: #{tpu_custom_call.1} parent=1 // pred_check_branch
      %20 = sbr.rel (0) target = $region9
    $region8: #{tpu_custom_call.1} parent=1 // pred_region
      _
    $region9: #{tpu_custom_call.1} parent=1 // pred_fallthru
      _
    // Predicated region
    $region10: #{tpu_custom_call.1} parent=1 // pred_check
      _
    $region11: #{tpu_custom_call.1} parent=1 // pred_check_branch
      %22 = sbr.rel (0) target = $region13
    $region12: #{tpu_custom_call.1} parent=1 // pred_region
      _
    $region13: #{tpu_custom_call.1} parent=1 // pred_fallthru
      _
    // Predicated region
    $region14: #{tpu_custom_call.1} parent=1 // pred_check
      _
    $region15: #{tpu_custom_call.1} parent=1 // pred_check_branch
      %24 = sbr.rel (0) target = $region17
    $region16: #{tpu_custom_call.1} parent=1 // pred_region
      _
    $region17: #{tpu_custom_call.1} parent=1 // pred_fallthru
      _
    // Predicated region
    $region18: #{tpu_custom_call.1} parent=1 // pred_check
      _
    $region19: #{tpu_custom_call.1} parent=1 // pred_check_branch
      %26 = sbr.rel (0) target = $region21
    $region20: #{tpu_custom_call.1} parent=1 // pred_region
      _
    $region21: #{tpu_custom_call.1} parent=1 // pred_fallthru
      _
    // Predicated region
    $region22: #{tpu_custom_call.1} parent=1 // pred_check
      _
    $region23: #{tpu_custom_call.1} parent=1 // pred_check_branch
      %28 = sbr.rel (0) target = $region25
    $region24: #{tpu_custom_call.1} parent=1 // pred_region
      _
    $region25: #{tpu_custom_call.1} parent=1 // pred_fallthru
      _
    // Predicated region
    $region26: #{tpu_custom_call.1} parent=1 // pred_check
      _
    $region27: #{tpu_custom_call.1} parent=1 // pred_check_branch
      %30 = sbr.rel (0) target = $region29
    $region28: #{tpu_custom_call.1} parent=1 // pred_region
      _
    $region29: #{tpu_custom_call.1} parent=1 // pred_fallthru
      _
    // Predicated region
    $region30: #{tpu_custom_call.1} parent=1 // pred_check
      _
    $region31: #{tpu_custom_call.1} parent=1 // pred_check_branch
      %32 = sbr.rel (0) target = $region33
    $region32: #{tpu_custom_call.1} parent=1 // pred_region
      _
    $region33: #{tpu_custom_call.1} parent=1 // pred_fallthru
      _
    // Predicated region
    $region34: #{tpu_custom_call.1} parent=1 // pred_check
      _
    $region35: #{tpu_custom_call.1} parent=1 // pred_check_branch
      %34 = sbr.rel (0) target = $region37
    $region36: #{tpu_custom_call.1} parent=1 // pred_region
      _
    $region37: #{tpu_custom_call.1} parent=1 // pred_fallthru
      _
    // Predicated region
    $region38: #{tpu_custom_call.1} parent=1 // pred_check
      _
    $region39: #{tpu_custom_call.1} parent=1 // pred_check_branch
      %36 = sbr.rel (0) target = $region41
    $region40: #{tpu_custom_call.1} parent=1 // pred_region
      _
    $region41: #{tpu_custom_call.1} parent=1 // pred_fallthru
      _
    // Predicated region
    $region42: #{tpu_custom_call.1} parent=1 // pred_check
      _
    $region43: #{tpu_custom_call.1} parent=1 // pred_check_branch
      %38 = sbr.rel (0) target = $region45
    $region44: #{tpu_custom_call.1} parent=1 // pred_region
      _
    $region45: #{tpu_custom_call.1} parent=1 // pred_fallthru
      _
    %v40 = vld [vmem:[%s0] sm:$0xff]
    %v41 = vld [vmem:[%s0 + $0x8] sm:$0xff]
    %v42 = vpack.c.bf16 %v40, %v40
    %v43 = vpack.c.bf16 %v41, %v41
    %v44 = vld [vmem:[%s1] sm:$0x7]
    %vm45 = vcmask 64512
    %v47 = vsel %vm45, %v44, 0
    %vm49 = vcmask 1043456
    %v51 = vsel %vm49, %v42, 0
    %v54 = vsel %vm49, %v43, 0
    %56 = vmatpush.bf16.msra.mxu0 0
    %57 = vmatpush.bf16.msra.mxu0 0
    %58 = vmatpush.bf16.msra.mxu0 0
    %59 = vmatpush.bf16.msra.mxu0 0
    %60 = vmatpush.bf16.msra.mxu0 0
    %61 = vmatpush.bf16.msra.mxu0 0
    %62 = vmatpush.bf16.msra.mxu0 0
    %63 = vmatpush.bf16.msra.mxu0 %v51
    %64 = vmatmul.bf16.gmra.mxu0 %v47
    %v65 = vpop.f32.mrf.mxu0
    %v66 = vadd.f32 0.0, %v65
    %v67 = vpop.f32.mrf.mxu0
    %68 = vdwg.mxu0
    %69 = vmatpush.bf16.msra.mxu0 0
    %70 = vmatpush.bf16.msra.mxu0 0
    %71 = vmatpush.bf16.msra.mxu0 0
    %72 = vmatpush.bf16.msra.mxu0 0
    %73 = vmatpush.bf16.msra.mxu0 0
    %74 = vmatpush.bf16.msra.mxu0 0
    %75 = vmatpush.bf16.msra.mxu0 0
    %76 = vmatpush.bf16.msra.mxu0 %v54
    %77 = vmatmul.bf16.gmra.mxu0 %v47
    %v78 = vpop.f32.mrf.mxu0
    %v79 = vadd.f32 0.0, %v78
    %v80 = vpop.f32.mrf.mxu0
    %81 = vdwg.mxu0
    %v82 = vld [vmem:[%s2] sm:$0x7]
    %v84 = vsel %vm45, %v82, 0
    %86 = vmatpush.bf16.msra.mxu0 0
    %87 = vmatpush.bf16.msra.mxu0 0
    %88 = vmatpush.bf16.msra.mxu0 0
    %89 = vmatpush.bf16.msra.mxu0 0
    %90 = vmatpush.bf16.msra.mxu0 0
    %91 = vmatpush.bf16.msra.mxu0 0
    %92 = vmatpush.bf16.msra.mxu0 0
    %93 = vmatpush.bf16.msra.mxu0 %v51
    %94 = vmatmul.bf16.gmra.mxu0 %v84
    %v95 = vpop.f32.mrf.mxu0
    %v96 = vadd.f32 0.0, %v95
    %v97 = vpop.f32.mrf.mxu0
    %98 = vdwg.mxu0
    %99 = vmatpush.bf16.msra.mxu0 0
    %100 = vmatpush.bf16.msra.mxu0 0
    %101 = vmatpush.bf16.msra.mxu0 0
    %102 = vmatpush.bf16.msra.mxu0 0
    %103 = vmatpush.bf16.msra.mxu0 0
    %104 = vmatpush.bf16.msra.mxu0 0
    %105 = vmatpush.bf16.msra.mxu0 0
    %106 = vmatpush.bf16.msra.mxu0 %v54
    %107 = vmatmul.bf16.gmra.mxu0 %v84
    %v108 = vpop.f32.mrf.mxu0
    %v109 = vadd.f32 0.0, %v108
    %v110 = vpop.f32.mrf.mxu0
    %111 = vdwg.mxu0
    %v112 = vld [vmem:[%s5] sm:$0x1f]
    %v113 = vld [vmem:[%s5 + $0x8] sm:$0x1f]
    %v114 = vld [vmem:[%s6] sm:$0x1f]
    %v115 = vld [vmem:[%s6 + $0x8] sm:$0x1f]
    %v116 = vmul.f32 %v66, %v112
    %v117 = vmul.f32 %v79, %v113
    %v118 = vmul.f32 %v96, %v114
    %v119 = vmul.f32 %v109, %v115
    %v120 = vsub.f32 %v116, %v118
    %v121 = vsub.f32 %v117, %v119
    %v122 = vpack.c.bf16 %v120, %v120
    %v123 = vpack.c.bf16 %v121, %v121
    %v124 = vmul.f32 %v66, %v114
    %v125 = vmul.f32 %v79, %v115
    %v126 = vmul.f32 %v96, %v112
    %v127 = vmul.f32 %v109, %v113
    %v128 = vadd.f32 %v124, %v126
    %v129 = vadd.f32 %v125, %v127
    %v130 = vpack.c.bf16 %v128, %v128
    %v131 = vpack.c.bf16 %v129, %v129
    %v132 = vld [vmem:[%s3] sm:$0xf]
    %v133 = vld [vmem:[%s4] sm:$0xf]
    %vm134 = vcmask 39936
    %v136 = vsel %vm134, %v133, 0
    %vm138 = vcmask 1041408
    %vm139 = vcmask 1042432
    %v140 = vsel %vm138, 4294967295, 65535
    %v141 = vsel %vm139, %v140, 0
    %v143 = vand.u32 %v130, %v141
    %v146 = vand.u32 %v131, %v141
    %148 = vmatpush.bf16.msra.mxu0 0
    %149 = vmatpush.bf16.msra.mxu0 0
    %150 = vmatpush.bf16.msra.mxu0 0
    %151 = vmatpush.bf16.msra.mxu0 0
    %152 = vmatpush.bf16.msra.mxu0 0
    %153 = vmatpush.bf16.msra.mxu0 0
    %154 = vmatpush.bf16.msra.mxu0 0
    %155 = vmatpush.bf16.msra.mxu0 %v143
    %156 = vmatmul.bf16.gmra.mxu0 %v136
    %v157 = vpop.f32.mrf.mxu0
    %v158 = vadd.f32 0.0, %v157
    %v159 = vpop.f32.mrf.mxu0
    %160 = vdwg.mxu0
    %161 = vmatpush.bf16.msra.mxu0 0
    %162 = vmatpush.bf16.msra.mxu0 0
    %163 = vmatpush.bf16.msra.mxu0 0
    %164 = vmatpush.bf16.msra.mxu0 0
    %165 = vmatpush.bf16.msra.mxu0 0
    %166 = vmatpush.bf16.msra.mxu0 0
    %167 = vmatpush.bf16.msra.mxu0 0
    %168 = vmatpush.bf16.msra.mxu0 %v146
    %169 = vmatmul.bf16.gmra.mxu0 %v136
    %v170 = vpop.f32.mrf.mxu0
    %v171 = vadd.f32 0.0, %v170
    %v172 = vpop.f32.mrf.mxu0
    %173 = vdwg.mxu0
    %v175 = vsel %vm134, %v132, 0
    %v178 = vand.u32 %v122, %v141
    %v181 = vand.u32 %v123, %v141
    %183 = vmatpush.bf16.msra.mxu0 0
    %184 = vmatpush.bf16.msra.mxu0 0
    %185 = vmatpush.bf16.msra.mxu0 0
    %186 = vmatpush.bf16.msra.mxu0 0
    %187 = vmatpush.bf16.msra.mxu0 0
    %188 = vmatpush.bf16.msra.mxu0 0
    %189 = vmatpush.bf16.msra.mxu0 0
    %190 = vmatpush.bf16.msra.mxu0 %v178
    %191 = vmatmul.bf16.gmra.mxu0 %v175
    %v192 = vpop.f32.mrf.mxu0
    %v193 = vadd.f32 %v158, %v192
    %v194 = vpop.f32.mrf.mxu0
    %195 = vdwg.mxu0
    %196 = vmatpush.bf16.msra.mxu0 0
    %197 = vmatpush.bf16.msra.mxu0 0
    %198 = vmatpush.bf16.msra.mxu0 0
    %199 = vmatpush.bf16.msra.mxu0 0
    %200 = vmatpush.bf16.msra.mxu0 0
    %201 = vmatpush.bf16.msra.mxu0 0
    %202 = vmatpush.bf16.msra.mxu0 0
    %203 = vmatpush.bf16.msra.mxu0 %v181
    %204 = vmatmul.bf16.gmra.mxu0 %v175
    %v205 = vpop.f32.mrf.mxu0
    %v206 = vadd.f32 %v171, %v205
    %v207 = vpop.f32.mrf.mxu0
    %208 = vdwg.mxu0
    %v209 = vadd.f32 %v193, %v40
    %v210 = vadd.f32 %v206, %v41
    %v211 = vld [vmem:[%s7] sm:$0xf]
    %v212 = vld [vmem:[%s7 + $0x4] sm:$0xf]
    %v213 = vld [vmem:[%s7 + $0x8] sm:$0xf]
    %v214 = vld [vmem:[%s7 + $0xc] sm:$0xf]
    %v215 = vld [vmem:[%s7 + $0x10] sm:$0xf]
    %v216 = vld [vmem:[%s7 + $0x14] sm:$0xf]
    %v217 = vld [vmem:[%s7 + $0x18] sm:$0xf]
    %v218 = vld [vmem:[%s7 + $0x1c] sm:$0xf]
    %v219 = vld [vmem:[%s7 + $0x20] sm:$0xf]
    %v220 = vld [vmem:[%s7 + $0x24] sm:$0xf]
    %v221 = vld [vmem:[%s7 + $0x28] sm:$0xf]
    %v222 = vld [vmem:[%s7 + $0x2c] sm:$0xf]
    %v223 = vld [vmem:[%s7 + $0x30] sm:$0xf]
    %v224 = vld [vmem:[%s7 + $0x34] sm:$0xf]
    %v225 = vld [vmem:[%s7 + $0x38] sm:$0xf]
    %v226 = vld [vmem:[%s7 + $0x3c] sm:$0xf]
    %v227 = vld [vmem:[%s7 + $0x40] sm:$0xf]
    %v228 = vld [vmem:[%s7 + $0x44] sm:$0xf]
    %v229 = vld [vmem:[%s7 + $0x48] sm:$0xf]
    %v230 = vld [vmem:[%s7 + $0x4c] sm:$0xf]
    %v231 = vld [vmem:[%s7 + $0x50] sm:$0xf]
    %v232 = vld [vmem:[%s7 + $0x54] sm:$0xf]
    %v233 = vld [vmem:[%s7 + $0x58] sm:$0xf]
    %v234 = vld [vmem:[%s7 + $0x5c] sm:$0xf]
    %v235 = vld [vmem:[%s7 + $0x60] sm:$0xf]
    %v236 = vld [vmem:[%s7 + $0x64] sm:$0xf]
    %v237 = vld [vmem:[%s7 + $0x68] sm:$0xf]
    %v238 = vld [vmem:[%s7 + $0x6c] sm:$0xf]
    %v239 = vld [vmem:[%s7 + $0x70] sm:$0xf]
    %v240 = vld [vmem:[%s7 + $0x74] sm:$0xf]
    %v241 = vld [vmem:[%s7 + $0x78] sm:$0xf]
    %v242 = vld [vmem:[%s7 + $0x7c] sm:$0xf]
    %v243 = vld [vmem:[%s8] sm:$0xff]
    %v244 = vpack.c.bf16 %v209, %v209
    %v245 = vpack.c.bf16 %v210, %v210
    %v278 = vunpack.c.l.b16 %v211
    %v279 = vunpack.c.l.b16 %v212
    %v280 = vunpack.c.l.b16 %v213
    %v281 = vunpack.c.l.b16 %v214
    %v282 = vunpack.c.l.b16 %v215
    %v283 = vunpack.c.l.b16 %v216
    %v284 = vunpack.c.l.b16 %v217
    %v285 = vunpack.c.l.b16 %v218
    %v286 = vunpack.c.l.b16 %v219
    %v287 = vunpack.c.l.b16 %v220
    %v288 = vunpack.c.l.b16 %v221
    %v289 = vunpack.c.l.b16 %v222
    %v290 = vunpack.c.l.b16 %v223
    %v291 = vunpack.c.l.b16 %v224
    %v292 = vunpack.c.l.b16 %v225
    %v293 = vunpack.c.l.b16 %v226
    %v294 = vunpack.c.l.b16 %v227
    %v295 = vunpack.c.l.b16 %v228
    %v296 = vunpack.c.l.b16 %v229
    %v297 = vunpack.c.l.b16 %v230
    %v298 = vunpack.c.l.b16 %v231
    %v299 = vunpack.c.l.b16 %v232
    %v300 = vunpack.c.l.b16 %v233
    %v301 = vunpack.c.l.b16 %v234
    %v302 = vunpack.c.l.b16 %v235
    %v303 = vunpack.c.l.b16 %v236
    %v304 = vunpack.c.l.b16 %v237
    %v305 = vunpack.c.l.b16 %v238
    %v306 = vunpack.c.l.b16 %v239
    %v307 = vunpack.c.l.b16 %v240
    %v308 = vunpack.c.l.b16 %v241
    %v309 = vunpack.c.l.b16 %v242
    %v310 = vpack.c.b16 %v279, %v278
    %v311 = vpack.c.b16 %v281, %v280
    %v312 = vpack.c.b16 %v283, %v282
    %v313 = vpack.c.b16 %v285, %v284
    %v314 = vpack.c.b16 %v287, %v286
    %v315 = vpack.c.b16 %v289, %v288
    %v316 = vpack.c.b16 %v291, %v290
    %v317 = vpack.c.b16 %v293, %v292
    %v318 = vpack.c.b16 %v295, %v294
    %v319 = vpack.c.b16 %v297, %v296
    %v320 = vpack.c.b16 %v299, %v298
    %v321 = vpack.c.b16 %v301, %v300
    %v322 = vpack.c.b16 %v303, %v302
    %v323 = vpack.c.b16 %v305, %v304
    %v324 = vpack.c.b16 %v307, %v306
    %v325 = vpack.c.b16 %v309, %v308
    %342 = vmatpush.bf16.msra.mxu0 %v317
    %343 = vmatpush.bf16.msra.mxu0 %v316
    %344 = vmatpush.bf16.msra.mxu0 %v315
    %345 = vmatpush.bf16.msra.mxu0 %v314
    %346 = vmatpush.bf16.msra.mxu0 %v313
    %347 = vmatpush.bf16.msra.mxu0 %v312
    %348 = vmatpush.bf16.msra.mxu0 %v311
    %349 = vmatpush.bf16.msra.mxu0 %v310
    %350 = vmatmul.bf16.gmra.mxu0 %v244
    %v351 = vpop.f32.mrf.mxu0
    %v352 = vadd.f32 0.0, %v351
    %v353 = vpop.f32.mrf.mxu0
    %354 = vdwg.mxu0
    %355 = vmatpush.bf16.msra.mxu0 %v325
    %356 = vmatpush.bf16.msra.mxu0 %v324
    %357 = vmatpush.bf16.msra.mxu0 %v323
    %358 = vmatpush.bf16.msra.mxu0 %v322
    %359 = vmatpush.bf16.msra.mxu0 %v321
    %360 = vmatpush.bf16.msra.mxu0 %v320
    %361 = vmatpush.bf16.msra.mxu0 %v319
    %362 = vmatpush.bf16.msra.mxu0 %v318
    %363 = vmatmul.bf16.gmra.mxu0 %v245
    %v364 = vpop.f32.mrf.mxu0
    %v365 = vadd.f32 %v352, %v364
    %v366 = vpop.f32.mrf.mxu0
    %367 = vdwg.mxu0
    %v368 = vmul.f32 %v365, 0.03125
    %v369 = vpack.c.bf16 %v368, %v368
    %v371 = vunpack.c.l.b16 %v243
    %v372 = vunpack.c.h.b16 %v243
    %v373 = vpack.c.b16 %v371, %v371
    %v374 = vpack.c.b16 %v372, %v372
    %v376 = vsel %vm45, %v369, 0
    %v379 = vsel %vm49, %v373, 0
    %v382 = vsel %vm49, %v374, 0
    %384 = vmatpush.bf16.msra.mxu0 0
    %385 = vmatpush.bf16.msra.mxu0 0
    %386 = vmatpush.bf16.msra.mxu0 0
    %387 = vmatpush.bf16.msra.mxu0 0
    %388 = vmatpush.bf16.msra.mxu0 0
    %389 = vmatpush.bf16.msra.mxu0 0
    %390 = vmatpush.bf16.msra.mxu0 0
    %391 = vmatpush.bf16.msra.mxu0 %v379
    %392 = vmatmul.bf16.gmra.mxu0 %v376
    %v393 = vpop.f32.mrf.mxu0
    %v394 = vadd.f32 0.0, %v393
    %v395 = vpop.f32.mrf.mxu0
    %396 = vdwg.mxu0
    %397 = vmatpush.bf16.msra.mxu0 0
    %398 = vmatpush.bf16.msra.mxu0 0
    %399 = vmatpush.bf16.msra.mxu0 0
    %400 = vmatpush.bf16.msra.mxu0 0
    %401 = vmatpush.bf16.msra.mxu0 0
    %402 = vmatpush.bf16.msra.mxu0 0
    %403 = vmatpush.bf16.msra.mxu0 0
    %404 = vmatpush.bf16.msra.mxu0 %v382
    %405 = vmatmul.bf16.gmra.mxu0 %v376
    %v406 = vpop.f32.mrf.mxu0
    %v407 = vadd.f32 0.0, %v406
    %v408 = vpop.f32.mrf.mxu0
    %409 = vdwg.mxu0
    %v410 = vsub.f32 %v209, %v394
    %v411 = vsub.f32 %v210, %v407
    %v412 = vmul.f32 %v410, %v410
    %v413 = vmul.f32 %v411, %v411
    %v414 = vpack.c.bf16 %v412, %v412
    %v415 = vpack.c.bf16 %v413, %v413
    %416 = vmatpush.bf16.msra.mxu0 %v317
    %417 = vmatpush.bf16.msra.mxu0 %v316
    %418 = vmatpush.bf16.msra.mxu0 %v315
    %419 = vmatpush.bf16.msra.mxu0 %v314
    %420 = vmatpush.bf16.msra.mxu0 %v313
    %421 = vmatpush.bf16.msra.mxu0 %v312
    %422 = vmatpush.bf16.msra.mxu0 %v311
    %423 = vmatpush.bf16.msra.mxu0 %v310
    %424 = vmatmul.bf16.gmra.mxu0 %v414
    %v425 = vpop.f32.mrf.mxu0
    %v426 = vadd.f32 0.0, %v425
    %v427 = vpop.f32.mrf.mxu0
    %428 = vdwg.mxu0
    %429 = vmatpush.bf16.msra.mxu0 %v325
    %430 = vmatpush.bf16.msra.mxu0 %v324
    %431 = vmatpush.bf16.msra.mxu0 %v323
    %432 = vmatpush.bf16.msra.mxu0 %v322
    %433 = vmatpush.bf16.msra.mxu0 %v321
    %434 = vmatpush.bf16.msra.mxu0 %v320
    %435 = vmatpush.bf16.msra.mxu0 %v319
    %436 = vmatpush.bf16.msra.mxu0 %v318
    %437 = vmatmul.bf16.gmra.mxu0 %v415
    %v438 = vpop.f32.mrf.mxu0
    %v439 = vadd.f32 %v426, %v438
    %v440 = vpop.f32.mrf.mxu0
    %441 = vdwg.mxu0
    %v442 = vmul.f32 %v439, 0.03125
    %v443 = vpack.c.bf16 %v442, %v442
    %v445 = vsel %vm45, %v443, 0
    %447 = vmatpush.bf16.msra.mxu0 0
    %448 = vmatpush.bf16.msra.mxu0 0
    %449 = vmatpush.bf16.msra.mxu0 0
    %450 = vmatpush.bf16.msra.mxu0 0
    %451 = vmatpush.bf16.msra.mxu0 0
    %452 = vmatpush.bf16.msra.mxu0 0
    %453 = vmatpush.bf16.msra.mxu0 0
    %454 = vmatpush.bf16.msra.mxu0 %v379
    %455 = vmatmul.bf16.gmra.mxu0 %v445
    %v456 = vpop.f32.mrf.mxu0
    %v457 = vadd.f32 1e-12, %v456
    %v458 = vpop.f32.mrf.mxu0
    %459 = vdwg.mxu0
    %460 = vmatpush.bf16.msra.mxu0 0
    %461 = vmatpush.bf16.msra.mxu0 0
    %462 = vmatpush.bf16.msra.mxu0 0
    %463 = vmatpush.bf16.msra.mxu0 0
    %464 = vmatpush.bf16.msra.mxu0 0
    %465 = vmatpush.bf16.msra.mxu0 0
    %466 = vmatpush.bf16.msra.mxu0 0
    %467 = vmatpush.bf16.msra.mxu0 %v382
    %468 = vmatmul.bf16.gmra.mxu0 %v445
    %v469 = vpop.f32.mrf.mxu0
    %v470 = vadd.f32 1e-12, %v469
    %v471 = vpop.f32.mrf.mxu0
    %472 = vdwg.mxu0
    %v473 = vrsqrt.pop %v457
    %v474 = vmul.f32 %v473, %v457
    %v475 = vmul.f32 %v474, %v473
    %v476 = vmul.f32 0.5, %v475
    %v477 = vsub.f32 1.5, %v476
    %v478 = vmul.f32 %v473, %v477
    %vm479 = vweird.f32 %v457
    %vm480 = vweird.f32 %v473
    %vm481 = vmor %vm479, %vm480
    %v482 = vsel %vm481, %v473, %v478
    %v483 = vrsqrt.pop %v470
    %v484 = vmul.f32 %v483, %v470
    %v485 = vmul.f32 %v484, %v483
    %v486 = vmul.f32 0.5, %v485
    %v487 = vsub.f32 1.5, %v486
    %v488 = vmul.f32 %v483, %v487
    %vm489 = vweird.f32 %v470
    %vm490 = vweird.f32 %v483
    %vm491 = vmor %vm489, %vm490
    %v492 = vsel %vm491, %v483, %v488
    %v493 = vmul.f32 %v410, %v482
    %v494 = vmul.f32 %v411, %v492
    %v495 = vld [vmem:[%s9] sm:$0x3]
    %v497 = vperm.slane %v495, 0
    %v498 = vperm.slane %v495, 1
    %v501 = vmul.f32 %v497, %v493
    %v502 = vmul.f32 %v498, %v494
    %v503 = vld [vmem:[%s10] sm:$0x3]
    %v505 = vperm.slane %v503, 0
    %v506 = vperm.slane %v503, 1
    %v509 = vadd.f32 %v501, %v505
    %v510 = vadd.f32 %v502, %v506
    %511 = vst [vmem:[#allocation2] sm:$0xff] %v509
    %512 = vst [vmem:[#allocation2 + $0x8] sm:$0xff] %v510
    // Predicated region
    $region46: #{tpu_custom_call.1} parent=1 // pred_check
      _
    $region47: #{tpu_custom_call.1} parent=1 // pred_check_branch
      %514 = sbr.rel (0) target = $region49
    $region48: #{tpu_custom_call.1} parent=1 // pred_region
      %516 = vsyncadd [#allocation3], 0
      %s518 = sshll.u32 [#allocation2], 4
      %s519 = int_to_ptr.vmem [resolvable:$true] %s518
      %s520 = sshll.u32 %s11, 4
      %s521 = int_to_ptr.hbm [resolvable:$true] %s520
      %523 = dma.vmem_to_hbm [thread:$0]  %s519, 256, %s521, [#allocation3]
    $region49: #{tpu_custom_call.1} parent=1 // pred_fallthru
      _
    // Predicated region
    $region50: #{tpu_custom_call.1} parent=1 // pred_check
      _
    $region51: #{tpu_custom_call.1} parent=1 // pred_check_branch
      %525 = sbr.rel (0) target = $region53
    $region52: #{tpu_custom_call.1} parent=1 // pred_region
      %527 = dma.done [#allocation3], 256
    $region53: #{tpu_custom_call.1} parent=1 // pred_fallthru
      _
    %528 = vsyncpa [#allocation3], 1

</llo_original>
